<compile_context>
chip_gen: v7x
topology: tpu7x:2x2x1
jax: 0.10.0
libtpu: 0.0.40
codegen_flags: <defaults>
</compile_context>

<pallas_src>
import functools

import jax
import jax.numpy as jnp
from jax.experimental import pallas as pl
from jax.experimental.pallas import tpu as pltpu

DIFFERENT_PIECES_EACH_SIDE = 4  # globalval.differentPiecesEachSide


# ----------------------------------------------------------------------------
# Fused kernel: conv1 + ReLU + conv2 + ReLU + conv3, all in VMEM.
#
# x_ref  : (N, Cin, HW)    activations, HW = H*W lane-dense per image
# w_ref  : (3*C, kdim)     packed weights; rows [l*C, (l+1)*C) = layer l,
#                          col (dy*3+dx)*Cin + ci = tap weight, col 9*Cin = bias,
#                          remaining cols (to sublane-aligned kdim) are zero
# o_ref  : (N, C, HW)      full-resolution layer-3 output (lane-dense, padded chans)
# stk_ref: (kdim, HW)      reused im2col scratch (+ constant bias / zero rows)
# ----------------------------------------------------------------------------
def _fused_zerolite_kernel(x_ref, w_ref, o_ref, stk_ref, *,
                           img_w, hw, n_batch, cin, kdim):
    # Constant tail rows of the scratch: one 1.0 row (bias multiplier) followed
    # by zero rows up to the sublane-aligned contraction dim.  Written once.
    tail = 9 * cin
    bias_row = (jax.lax.broadcasted_iota(jnp.int32, (kdim - tail, hw), 0) == 0)
    stk_ref[pl.ds(tail, kdim - tail), :] = bias_row.astype(jnp.float32)

    def conv3x3(a, layer, relu):
        # Write the 9 shifted taps into the shared scratch:
        # stk[t*Cin + ci, p] == a[ci, p + dy*W + dx] for every position we keep
        # (roll-wrap garbage lives only in the 2-pixel right/bottom margins,
        #  which the valid output region never reads).
        for dy in range(3):
            for dx in range(3):
                s = dy * img_w + dx
                t = dy * 3 + dx
                tap = a if s == 0 else pltpu.roll(a, hw - s, axis=1)
                stk_ref[pl.ds(t * cin, cin), :] = tap
        w = w_ref[pl.ds(layer * cin, cin), :]                    # (C, kdim)
        y = jnp.dot(w, stk_ref[...],
                    preferred_element_type=jnp.float32)          # (C, HW), bias folded
        return jnp.maximum(y, 0.0) if relu else y

    for n in range(n_batch):                                     # tiny batch: static unroll
        a1 = conv3x3(x_ref[n], 0, relu=True)
        a2 = conv3x3(a1, 1, relu=True)
        o_ref[n] = conv3x3(a2, 2, relu=False)


# ----------------------------------------------------------------------------
# Weight packing (done once, outside the forward path).
# ----------------------------------------------------------------------------
def pack_params(params):
    """Pack the 3 (w, b) pairs into one (3*C, kdim) matrix with bias folded in."""
    (w1, b1), (w2, b2), (w3, b3) = params
    c2 = w1.shape[0]                 # 8
    cin = w1.shape[1]                # 8
    k = 9 * cin                      # 72
    kdim = ((k + 1 + 7) // 8) * 8    # 80: +bias row, padded to 8 sublanes

    def pack(w, b):
        o = w.shape[0]
        # (O, Cin, 3, 3) -> (O, 72) with column index (dy*3 + dx)*Cin + ci,
        # matching the tap-major write order inside the kernel.
        wm = jnp.transpose(w, (0, 2, 3, 1)).reshape(o, k)
        row = jnp.concatenate(
            [wm, b[:, None], jnp.zeros((o, kdim - k - 1), wm.dtype)], axis=1)
        if o < c2:                    # conv3: pad 4 out-channels -> 8 sublanes
            row = jnp.pad(row, ((0, c2 - o), (0, 0)))
        return row

    return jnp.concatenate([pack(w1, b1), pack(w2, b2), pack(w3, b3)],
                           axis=0).astype(jnp.float32)           # (24, 80)


@jax.jit
def zerolite_forward(x, w_packed):
    """x: NCHW float32. Returns NCHW valid-region output of the 3-conv stack."""
    n, c, h, w = x.shape
    hw = h * w
    kdim = w_packed.shape[1]

    # NCHW -> (N, C, H*W): trailing-dim merge only (no transpose, no pad).
    x3 = x.reshape(n, c, hw).astype(jnp.float32)

    kernel = functools.partial(_fused_zerolite_kernel, img_w=w, hw=hw,
                               n_batch=n, cin=c, kdim=kdim)
    out = pl.pallas_call(
        kernel,
        out_shape=jax.ShapeDtypeStruct((n, c, hw), jnp.float32),
        in_specs=[pl.BlockSpec((n, c, hw), lambda: (0, 0, 0)),
                  pl.BlockSpec(w_packed.shape, lambda: (0, 0))],
        out_specs=pl.BlockSpec((n, c, hw), lambda: (0, 0, 0)),
        scratch_shapes=[pltpu.VMEM((kdim, hw), jnp.float32)],
    )(x3, w_packed)

    # Free reshape back to NCHW; single slice drops padded channels + margins.
    out = out.reshape(n, c, h, w)
    return out[:, :DIFFERENT_PIECES_EACH_SIDE, :h - 6, :w - 6]


# ----------------------------------------------------------------------------
# Parameter init (PyTorch Conv2d default: U(-1/sqrt(fan_in), 1/sqrt(fan_in)))
# ----------------------------------------------------------------------------
def init_params(key):
    c2 = DIFFERENT_PIECES_EACH_SIDE * 2  # 8
    c1 = DIFFERENT_PIECES_EACH_SIDE      # 4
    keys = jax.random.split(key, 6)

    def conv_init(kw, kb, cin, cout):
        fan_in = cin * 9
        bound = 1.0 / jnp.sqrt(fan_in)
        w = jax.random.uniform(kw, (cout, cin, 3, 3), jnp.float32, -bound, bound)
        b = jax.random.uniform(kb, (cout,), jnp.float32, -bound, bound)
        return w, b

    p1 = conv_init(keys[0], keys[1], c2, c2)
    p2 = conv_init(keys[2], keys[3], c2, c2)
    p3 = conv_init(keys[4], keys[5], c2, c1)
    return (p1, p2, p3)


def _reference_forward(x, params):
    """Pure-JAX reference (lax.conv) for a correctness sanity check."""
    (w1, b1), (w2, b2), (w3, b3) = params

    def conv(x, w, b):
        y = jax.lax.conv_general_dilated(
            x, w, window_strides=(1, 1), padding="VALID",
            dimension_numbers=("NCHW", "OIHW", "NCHW"))
        return y + b.reshape(1, -1, 1, 1)

    x = jnp.maximum(conv(x, w1, b1), 0.0)
    x = jnp.maximum(conv(x, w2, b2), 0.0)
    return conv(x, w3, b3)


if __name__ == "__main__":
    key = jax.random.PRNGKey(0)
    k_params, k_x = jax.random.split(key)

    params = init_params(k_params)
    w_packed = pack_params(params)   # done once; not on the forward path

    # Input: batch=2, channels = differentPiecesEachSide*2 = 8, spatial 16x16.
    x = jax.random.normal(k_x, (2, DIFFERENT_PIECES_EACH_SIDE * 2, 16, 16),
                          dtype=jnp.float32)

    out = jax.block_until_ready(zerolite_forward(x, w_packed))
    assert out.shape == (2, DIFFERENT_PIECES_EACH_SIDE, 10, 10), out.shape

    ref = jax.block_until_ready(_reference_forward(x, params))
    assert jnp.allclose(out, ref, atol=1e-4, rtol=1e-4), \
        float(jnp.max(jnp.abs(out - ref)))

    print("KERNEL_OK")
</pallas_src>

<mosaic_0001>
module attributes {stable_mosaic.version = 11 : i64} {
  func.func @_fused_zerolite_kernel(%arg0: memref<2x8x256xf32, #tpu.memory_space<vmem>>, %arg1: memref<24x80xf32, #tpu.memory_space<vmem>>, %arg2: memref<2x8x256xf32, #tpu.memory_space<vmem>>, %arg3: memref<80x256xf32, #tpu.memory_space<vmem>>) attributes {dimension_semantics = [], scalar_prefetch = 0 : i64, scratch_operands = 1 : i64, tpu.core_type = #tpu.core_type<tc>} {
    %0 = tpu.iota {dimensions = array<i32: 0>} : vector<8x256xi32>
    %c0_i32 = arith.constant 0 : i32
    %1 = vector.broadcast %c0_i32 : i32 to vector<8x256xi32>
    %2 = arith.cmpi eq, %0, %1 : vector<8x256xi32>
    %3 = arith.extui %2 : vector<8x256xi1> to vector<8x256xi32>
    %4 = arith.sitofp %3 : vector<8x256xi32> to vector<8x256xf32>
    %c72 = arith.constant 72 : index
    %c0 = arith.constant 0 : index
    %5 = vector.load %arg3[%c72, %c0] : memref<80x256xf32, #tpu.memory_space<vmem>>, vector<8x256xf32>
    tpu.vector_store %arg3[%c72, %c0], %4 {strides = array<i32>} : memref<80x256xf32, #tpu.memory_space<vmem>>, vector<8x256xf32>,
    %c0_0 = arith.constant 0 : index
    %c0_1 = arith.constant 0 : index
    %c0_2 = arith.constant 0 : index
    %6 = vector.load %arg0[%c0_0, %c0_1, %c0_2] : memref<2x8x256xf32, #tpu.memory_space<vmem>>, vector<1x8x256xf32>
    %7 = vector.shape_cast %6 : vector<1x8x256xf32> to vector<8x256xf32>
    %c0_3 = arith.constant 0 : index
    %c0_4 = arith.constant 0 : index
    %8 = vector.load %arg3[%c0_3, %c0_4] : memref<80x256xf32, #tpu.memory_space<vmem>>, vector<8x256xf32>
    tpu.vector_store %arg3[%c0_3, %c0_4], %7 {strides = array<i32>} : memref<80x256xf32, #tpu.memory_space<vmem>>, vector<8x256xf32>,
    %c255_i32 = arith.constant 255 : i32
    %9 = tpu.dynamic_rotate %7 by %c255_i32 dim 1 : vector<8x256xf32>, i32 -> vector<8x256xf32>
    %c8 = arith.constant 8 : index
    %c0_5 = arith.constant 0 : index
    %10 = vector.load %arg3[%c8, %c0_5] : memref<80x256xf32, #tpu.memory_space<vmem>>, vector<8x256xf32>
    tpu.vector_store %arg3[%c8, %c0_5], %9 {strides = array<i32>} : memref<80x256xf32, #tpu.memory_space<vmem>>, vector<8x256xf32>,
    %c254_i32 = arith.constant 254 : i32
    %11 = tpu.dynamic_rotate %7 by %c254_i32 dim 1 : vector<8x256xf32>, i32 -> vector<8x256xf32>
    %c16 = arith.constant 16 : index
    %c0_6 = arith.constant 0 : index
    %12 = vector.load %arg3[%c16, %c0_6] : memref<80x256xf32, #tpu.memory_space<vmem>>, vector<8x256xf32>
    tpu.vector_store %arg3[%c16, %c0_6], %11 {strides = array<i32>} : memref<80x256xf32, #tpu.memory_space<vmem>>, vector<8x256xf32>,
    %c240_i32 = arith.constant 240 : i32
    %13 = tpu.dynamic_rotate %7 by %c240_i32 dim 1 : vector<8x256xf32>, i32 -> vector<8x256xf32>
    %c24 = arith.constant 24 : index
    %c0_7 = arith.constant 0 : index
    %14 = vector.load %arg3[%c24, %c0_7] : memref<80x256xf32, #tpu.memory_space<vmem>>, vector<8x256xf32>
    tpu.vector_store %arg3[%c24, %c0_7], %13 {strides = array<i32>} : memref<80x256xf32, #tpu.memory_space<vmem>>, vector<8x256xf32>,
    %c239_i32 = arith.constant 239 : i32
    %15 = tpu.dynamic_rotate %7 by %c239_i32 dim 1 : vector<8x256xf32>, i32 -> vector<8x256xf32>
    %c32 = arith.constant 32 : index
    %c0_8 = arith.constant 0 : index
    %16 = vector.load %arg3[%c32, %c0_8] : memref<80x256xf32, #tpu.memory_space<vmem>>, vector<8x256xf32>
    tpu.vector_store %arg3[%c32, %c0_8], %15 {strides = array<i32>} : memref<80x256xf32, #tpu.memory_space<vmem>>, vector<8x256xf32>,
    %c238_i32 = arith.constant 238 : i32
    %17 = tpu.dynamic_rotate %7 by %c238_i32 dim 1 : vector<8x256xf32>, i32 -> vector<8x256xf32>
    %c40 = arith.constant 40 : index
    %c0_9 = arith.constant 0 : index
    %18 = vector.load %arg3[%c40, %c0_9] : memref<80x256xf32, #tpu.memory_space<vmem>>, vector<8x256xf32>
    tpu.vector_store %arg3[%c40, %c0_9], %17 {strides = array<i32>} : memref<80x256xf32, #tpu.memory_space<vmem>>, vector<8x256xf32>,
    %c224_i32 = arith.constant 224 : i32
    %19 = tpu.dynamic_rotate %7 by %c224_i32 dim 1 : vector<8x256xf32>, i32 -> vector<8x256xf32>
    %c48 = arith.constant 48 : index
    %c0_10 = arith.constant 0 : index
    %20 = vector.load %arg3[%c48, %c0_10] : memref<80x256xf32, #tpu.memory_space<vmem>>, vector<8x256xf32>
    tpu.vector_store %arg3[%c48, %c0_10], %19 {strides = array<i32>} : memref<80x256xf32, #tpu.memory_space<vmem>>, vector<8x256xf32>,
    %c223_i32 = arith.constant 223 : i32
    %21 = tpu.dynamic_rotate %7 by %c223_i32 dim 1 : vector<8x256xf32>, i32 -> vector<8x256xf32>
    %c56 = arith.constant 56 : index
    %c0_11 = arith.constant 0 : index
    %22 = vector.load %arg3[%c56, %c0_11] : memref<80x256xf32, #tpu.memory_space<vmem>>, vector<8x256xf32>
    tpu.vector_store %arg3[%c56, %c0_11], %21 {strides = array<i32>} : memref<80x256xf32, #tpu.memory_space<vmem>>, vector<8x256xf32>,
    %c222_i32 = arith.constant 222 : i32
    %23 = tpu.dynamic_rotate %7 by %c222_i32 dim 1 : vector<8x256xf32>, i32 -> vector<8x256xf32>
    %c64 = arith.constant 64 : index
    %c0_12 = arith.constant 0 : index
    %24 = vector.load %arg3[%c64, %c0_12] : memref<80x256xf32, #tpu.memory_space<vmem>>, vector<8x256xf32>
    tpu.vector_store %arg3[%c64, %c0_12], %23 {strides = array<i32>} : memref<80x256xf32, #tpu.memory_space<vmem>>, vector<8x256xf32>,
    %c0_13 = arith.constant 0 : index
    %c0_14 = arith.constant 0 : index
    %25 = vector.load %arg1[%c0_13, %c0_14] : memref<24x80xf32, #tpu.memory_space<vmem>>, vector<8x80xf32>
    %c0_15 = arith.constant 0 : index
    %c0_16 = arith.constant 0 : index
    %26 = vector.load %arg3[%c0_15, %c0_16] : memref<80x256xf32, #tpu.memory_space<vmem>>, vector<80x256xf32>
    %cst = arith.constant dense<0.000000e+00> : vector<8x256xf32>
    %27 = tpu.matmul %25, %26, %cst {dimension_numbers = #tpu.dot_dimension_numbers<[1], [0], [0], [1], [0, 0, 1, 1], [], []>} : vector<8x80xf32>, vector<80x256xf32>, vector<8x256xf32> -> vector<8x256xf32>
    %cst_17 = arith.constant 0.000000e+00 : f32
    %28 = vector.broadcast %cst_17 : f32 to vector<8x256xf32>
    %29 = arith.maximumf %27, %28 : vector<8x256xf32>
    %c0_18 = arith.constant 0 : index
    %c0_19 = arith.constant 0 : index
    %30 = vector.load %arg3[%c0_18, %c0_19] : memref<80x256xf32, #tpu.memory_space<vmem>>, vector<8x256xf32>
    tpu.vector_store %arg3[%c0_18, %c0_19], %29 {strides = array<i32>} : memref<80x256xf32, #tpu.memory_space<vmem>>, vector<8x256xf32>,
    %c255_i32_20 = arith.constant 255 : i32
    %31 = tpu.dynamic_rotate %29 by %c255_i32_20 dim 1 : vector<8x256xf32>, i32 -> vector<8x256xf32>
    %c8_21 = arith.constant 8 : index
    %c0_22 = arith.constant 0 : index
    %32 = vector.load %arg3[%c8_21, %c0_22] : memref<80x256xf32, #tpu.memory_space<vmem>>, vector<8x256xf32>
    tpu.vector_store %arg3[%c8_21, %c0_22], %31 {strides = array<i32>} : memref<80x256xf32, #tpu.memory_space<vmem>>, vector<8x256xf32>,
    %c254_i32_23 = arith.constant 254 : i32
    %33 = tpu.dynamic_rotate %29 by %c254_i32_23 dim 1 : vector<8x256xf32>, i32 -> vector<8x256xf32>
    %c16_24 = arith.constant 16 : index
    %c0_25 = arith.constant 0 : index
    %34 = vector.load %arg3[%c16_24, %c0_25] : memref<80x256xf32, #tpu.memory_space<vmem>>, vector<8x256xf32>
    tpu.vector_store %arg3[%c16_24, %c0_25], %33 {strides = array<i32>} : memref<80x256xf32, #tpu.memory_space<vmem>>, vector<8x256xf32>,
    %c240_i32_26 = arith.constant 240 : i32
    %35 = tpu.dynamic_rotate %29 by %c240_i32_26 dim 1 : vector<8x256xf32>, i32 -> vector<8x256xf32>
    %c24_27 = arith.constant 24 : index
    %c0_28 = arith.constant 0 : index
    %36 = vector.load %arg3[%c24_27, %c0_28] : memref<80x256xf32, #tpu.memory_space<vmem>>, vector<8x256xf32>
    tpu.vector_store %arg3[%c24_27, %c0_28], %35 {strides = array<i32>} : memref<80x256xf32, #tpu.memory_space<vmem>>, vector<8x256xf32>,
    %c239_i32_29 = arith.constant 239 : i32
    %37 = tpu.dynamic_rotate %29 by %c239_i32_29 dim 1 : vector<8x256xf32>, i32 -> vector<8x256xf32>
    %c32_30 = arith.constant 32 : index
    %c0_31 = arith.constant 0 : index
    %38 = vector.load %arg3[%c32_30, %c0_31] : memref<80x256xf32, #tpu.memory_space<vmem>>, vector<8x256xf32>
    tpu.vector_store %arg3[%c32_30, %c0_31], %37 {strides = array<i32>} : memref<80x256xf32, #tpu.memory_space<vmem>>, vector<8x256xf32>,
    %c238_i32_32 = arith.constant 238 : i32
    %39 = tpu.dynamic_rotate %29 by %c238_i32_32 dim 1 : vector<8x256xf32>, i32 -> vector<8x256xf32>
    %c40_33 = arith.constant 40 : index
    %c0_34 = arith.constant 0 : index
    %40 = vector.load %arg3[%c40_33, %c0_34] : memref<80x256xf32, #tpu.memory_space<vmem>>, vector<8x256xf32>
    tpu.vector_store %arg3[%c40_33, %c0_34], %39 {strides = array<i32>} : memref<80x256xf32, #tpu.memory_space<vmem>>, vector<8x256xf32>,
    %c224_i32_35 = arith.constant 224 : i32
    %41 = tpu.dynamic_rotate %29 by %c224_i32_35 dim 1 : vector<8x256xf32>, i32 -> vector<8x256xf32>
    %c48_36 = arith.constant 48 : index
    %c0_37 = arith.constant 0 : index
    %42 = vector.load %arg3[%c48_36, %c0_37] : memref<80x256xf32, #tpu.memory_space<vmem>>, vector<8x256xf32>
    tpu.vector_store %arg3[%c48_36, %c0_37], %41 {strides = array<i32>} : memref<80x256xf32, #tpu.memory_space<vmem>>, vector<8x256xf32>,
    %c223_i32_38 = arith.constant 223 : i32
    %43 = tpu.dynamic_rotate %29 by %c223_i32_38 dim 1 : vector<8x256xf32>, i32 -> vector<8x256xf32>
    %c56_39 = arith.constant 56 : index
    %c0_40 = arith.constant 0 : index
    %44 = vector.load %arg3[%c56_39, %c0_40] : memref<80x256xf32, #tpu.memory_space<vmem>>, vector<8x256xf32>
    tpu.vector_store %arg3[%c56_39, %c0_40], %43 {strides = array<i32>} : memref<80x256xf32, #tpu.memory_space<vmem>>, vector<8x256xf32>,
    %c222_i32_41 = arith.constant 222 : i32
    %45 = tpu.dynamic_rotate %29 by %c222_i32_41 dim 1 : vector<8x256xf32>, i32 -> vector<8x256xf32>
    %c64_42 = arith.constant 64 : index
    %c0_43 = arith.constant 0 : index
    %46 = vector.load %arg3[%c64_42, %c0_43] : memref<80x256xf32, #tpu.memory_space<vmem>>, vector<8x256xf32>
    tpu.vector_store %arg3[%c64_42, %c0_43], %45 {strides = array<i32>} : memref<80x256xf32, #tpu.memory_space<vmem>>, vector<8x256xf32>,
    %c8_44 = arith.constant 8 : index
    %c0_45 = arith.constant 0 : index
    %47 = vector.load %arg1[%c8_44, %c0_45] : memref<24x80xf32, #tpu.memory_space<vmem>>, vector<8x80xf32>
    %c0_46 = arith.constant 0 : index
    %c0_47 = arith.constant 0 : index
    %48 = vector.load %arg3[%c0_46, %c0_47] : memref<80x256xf32, #tpu.memory_space<vmem>>, vector<80x256xf32>
    %cst_48 = arith.constant dense<0.000000e+00> : vector<8x256xf32>
    %49 = tpu.matmul %47, %48, %cst_48 {dimension_numbers = #tpu.dot_dimension_numbers<[1], [0], [0], [1], [0, 0, 1, 1], [], []>} : vector<8x80xf32>, vector<80x256xf32>, vector<8x256xf32> -> vector<8x256xf32>
    %cst_49 = arith.constant 0.000000e+00 : f32
    %50 = vector.broadcast %cst_49 : f32 to vector<8x256xf32>
    %51 = arith.maximumf %49, %50 : vector<8x256xf32>
    %c0_50 = arith.constant 0 : index
    %c0_51 = arith.constant 0 : index
    %52 = vector.load %arg3[%c0_50, %c0_51] : memref<80x256xf32, #tpu.memory_space<vmem>>, vector<8x256xf32>
    tpu.vector_store %arg3[%c0_50, %c0_51], %51 {strides = array<i32>} : memref<80x256xf32, #tpu.memory_space<vmem>>, vector<8x256xf32>,
    %c255_i32_52 = arith.constant 255 : i32
    %53 = tpu.dynamic_rotate %51 by %c255_i32_52 dim 1 : vector<8x256xf32>, i32 -> vector<8x256xf32>
    %c8_53 = arith.constant 8 : index
    %c0_54 = arith.constant 0 : index
    %54 = vector.load %arg3[%c8_53, %c0_54] : memref<80x256xf32, #tpu.memory_space<vmem>>, vector<8x256xf32>
    tpu.vector_store %arg3[%c8_53, %c0_54], %53 {strides = array<i32>} : memref<80x256xf32, #tpu.memory_space<vmem>>, vector<8x256xf32>,
    %c254_i32_55 = arith.constant 254 : i32
    %55 = tpu.dynamic_rotate %51 by %c254_i32_55 dim 1 : vector<8x256xf32>, i32 -> vector<8x256xf32>
    %c16_56 = arith.constant 16 : index
    %c0_57 = arith.constant 0 : index
    %56 = vector.load %arg3[%c16_56, %c0_57] : memref<80x256xf32, #tpu.memory_space<vmem>>, vector<8x256xf32>
    tpu.vector_store %arg3[%c16_56, %c0_57], %55 {strides = array<i32>} : memref<80x256xf32, #tpu.memory_space<vmem>>, vector<8x256xf32>,
    %c240_i32_58 = arith.constant 240 : i32
    %57 = tpu.dynamic_rotate %51 by %c240_i32_58 dim 1 : vector<8x256xf32>, i32 -> vector<8x256xf32>
    %c24_59 = arith.constant 24 : index
    %c0_60 = arith.constant 0 : index
    %58 = vector.load %arg3[%c24_59, %c0_60] : memref<80x256xf32, #tpu.memory_space<vmem>>, vector<8x256xf32>
    tpu.vector_store %arg3[%c24_59, %c0_60], %57 {strides = array<i32>} : memref<80x256xf32, #tpu.memory_space<vmem>>, vector<8x256xf32>,
    %c239_i32_61 = arith.constant 239 : i32
    %59 = tpu.dynamic_rotate %51 by %c239_i32_61 dim 1 : vector<8x256xf32>, i32 -> vector<8x256xf32>
    %c32_62 = arith.constant 32 : index
    %c0_63 = arith.constant 0 : index
    %60 = vector.load %arg3[%c32_62, %c0_63] : memref<80x256xf32, #tpu.memory_space<vmem>>, vector<8x256xf32>
    tpu.vector_store %arg3[%c32_62, %c0_63], %59 {strides = array<i32>} : memref<80x256xf32, #tpu.memory_space<vmem>>, vector<8x256xf32>,
    %c238_i32_64 = arith.constant 238 : i32
    %61 = tpu.dynamic_rotate %51 by %c238_i32_64 dim 1 : vector<8x256xf32>, i32 -> vector<8x256xf32>
    %c40_65 = arith.constant 40 : index
    %c0_66 = arith.constant 0 : index
    %62 = vector.load %arg3[%c40_65, %c0_66] : memref<80x256xf32, #tpu.memory_space<vmem>>, vector<8x256xf32>
    tpu.vector_store %arg3[%c40_65, %c0_66], %61 {strides = array<i32>} : memref<80x256xf32, #tpu.memory_space<vmem>>, vector<8x256xf32>,
    %c224_i32_67 = arith.constant 224 : i32
    %63 = tpu.dynamic_rotate %51 by %c224_i32_67 dim 1 : vector<8x256xf32>, i32 -> vector<8x256xf32>
    %c48_68 = arith.constant 48 : index
    %c0_69 = arith.constant 0 : index
    %64 = vector.load %arg3[%c48_68, %c0_69] : memref<80x256xf32, #tpu.memory_space<vmem>>, vector<8x256xf32>
    tpu.vector_store %arg3[%c48_68, %c0_69], %63 {strides = array<i32>} : memref<80x256xf32, #tpu.memory_space<vmem>>, vector<8x256xf32>,
    %c223_i32_70 = arith.constant 223 : i32
    %65 = tpu.dynamic_rotate %51 by %c223_i32_70 dim 1 : vector<8x256xf32>, i32 -> vector<8x256xf32>
    %c56_71 = arith.constant 56 : index
    %c0_72 = arith.constant 0 : index
    %66 = vector.load %arg3[%c56_71, %c0_72] : memref<80x256xf32, #tpu.memory_space<vmem>>, vector<8x256xf32>
    tpu.vector_store %arg3[%c56_71, %c0_72], %65 {strides = array<i32>} : memref<80x256xf32, #tpu.memory_space<vmem>>, vector<8x256xf32>,
    %c222_i32_73 = arith.constant 222 : i32
    %67 = tpu.dynamic_rotate %51 by %c222_i32_73 dim 1 : vector<8x256xf32>, i32 -> vector<8x256xf32>
    %c64_74 = arith.constant 64 : index
    %c0_75 = arith.constant 0 : index
    %68 = vector.load %arg3[%c64_74, %c0_75] : memref<80x256xf32, #tpu.memory_space<vmem>>, vector<8x256xf32>
    tpu.vector_store %arg3[%c64_74, %c0_75], %67 {strides = array<i32>} : memref<80x256xf32, #tpu.memory_space<vmem>>, vector<8x256xf32>,
    %c16_76 = arith.constant 16 : index
    %c0_77 = arith.constant 0 : index
    %69 = vector.load %arg1[%c16_76, %c0_77] : memref<24x80xf32, #tpu.memory_space<vmem>>, vector<8x80xf32>
    %c0_78 = arith.constant 0 : index
    %c0_79 = arith.constant 0 : index
    %70 = vector.load %arg3[%c0_78, %c0_79] : memref<80x256xf32, #tpu.memory_space<vmem>>, vector<80x256xf32>
    %cst_80 = arith.constant dense<0.000000e+00> : vector<8x256xf32>
    %71 = tpu.matmul %69, %70, %cst_80 {dimension_numbers = #tpu.dot_dimension_numbers<[1], [0], [0], [1], [0, 0, 1, 1], [], []>} : vector<8x80xf32>, vector<80x256xf32>, vector<8x256xf32> -> vector<8x256xf32>
    %c0_81 = arith.constant 0 : index
    %c0_82 = arith.constant 0 : index
    %c0_83 = arith.constant 0 : index
    %72 = vector.load %arg2[%c0_81, %c0_82, %c0_83] : memref<2x8x256xf32, #tpu.memory_space<vmem>>, vector<1x8x256xf32>
    %73 = vector.shape_cast %72 : vector<1x8x256xf32> to vector<8x256xf32>
    %74 = vector.shape_cast %71 : vector<8x256xf32> to vector<1x8x256xf32>
    tpu.vector_store %arg2[%c0_81, %c0_82, %c0_83], %74 {strides = array<i32>} : memref<2x8x256xf32, #tpu.memory_space<vmem>>, vector<1x8x256xf32>,
    %c1 = arith.constant 1 : index
    %c0_84 = arith.constant 0 : index
    %c0_85 = arith.constant 0 : index
    %75 = vector.load %arg0[%c1, %c0_84, %c0_85] : memref<2x8x256xf32, #tpu.memory_space<vmem>>, vector<1x8x256xf32>
    %76 = vector.shape_cast %75 : vector<1x8x256xf32> to vector<8x256xf32>
    %c0_86 = arith.constant 0 : index
    %c0_87 = arith.constant 0 : index
    %77 = vector.load %arg3[%c0_86, %c0_87] : memref<80x256xf32, #tpu.memory_space<vmem>>, vector<8x256xf32>
    tpu.vector_store %arg3[%c0_86, %c0_87], %76 {strides = array<i32>} : memref<80x256xf32, #tpu.memory_space<vmem>>, vector<8x256xf32>,
    %c255_i32_88 = arith.constant 255 : i32
    %78 = tpu.dynamic_rotate %76 by %c255_i32_88 dim 1 : vector<8x256xf32>, i32 -> vector<8x256xf32>
    %c8_89 = arith.constant 8 : index
    %c0_90 = arith.constant 0 : index
    %79 = vector.load %arg3[%c8_89, %c0_90] : memref<80x256xf32, #tpu.memory_space<vmem>>, vector<8x256xf32>
    tpu.vector_store %arg3[%c8_89, %c0_90], %78 {strides = array<i32>} : memref<80x256xf32, #tpu.memory_space<vmem>>, vector<8x256xf32>,
    %c254_i32_91 = arith.constant 254 : i32
    %80 = tpu.dynamic_rotate %76 by %c254_i32_91 dim 1 : vector<8x256xf32>, i32 -> vector<8x256xf32>
    %c16_92 = arith.constant 16 : index
    %c0_93 = arith.constant 0 : index
    %81 = vector.load %arg3[%c16_92, %c0_93] : memref<80x256xf32, #tpu.memory_space<vmem>>, vector<8x256xf32>
    tpu.vector_store %arg3[%c16_92, %c0_93], %80 {strides = array<i32>} : memref<80x256xf32, #tpu.memory_space<vmem>>, vector<8x256xf32>,
    %c240_i32_94 = arith.constant 240 : i32
    %82 = tpu.dynamic_rotate %76 by %c240_i32_94 dim 1 : vector<8x256xf32>, i32 -> vector<8x256xf32>
    %c24_95 = arith.constant 24 : index
    %c0_96 = arith.constant 0 : index
    %83 = vector.load %arg3[%c24_95, %c0_96] : memref<80x256xf32, #tpu.memory_space<vmem>>, vector<8x256xf32>
    tpu.vector_store %arg3[%c24_95, %c0_96], %82 {strides = array<i32>} : memref<80x256xf32, #tpu.memory_space<vmem>>, vector<8x256xf32>,
    %c239_i32_97 = arith.constant 239 : i32
    %84 = tpu.dynamic_rotate %76 by %c239_i32_97 dim 1 : vector<8x256xf32>, i32 -> vector<8x256xf32>
    %c32_98 = arith.constant 32 : index
    %c0_99 = arith.constant 0 : index
    %85 = vector.load %arg3[%c32_98, %c0_99] : memref<80x256xf32, #tpu.memory_space<vmem>>, vector<8x256xf32>
    tpu.vector_store %arg3[%c32_98, %c0_99], %84 {strides = array<i32>} : memref<80x256xf32, #tpu.memory_space<vmem>>, vector<8x256xf32>,
    %c238_i32_100 = arith.constant 238 : i32
    %86 = tpu.dynamic_rotate %76 by %c238_i32_100 dim 1 : vector<8x256xf32>, i32 -> vector<8x256xf32>
    %c40_101 = arith.constant 40 : index
    %c0_102 = arith.constant 0 : index
    %87 = vector.load %arg3[%c40_101, %c0_102] : memref<80x256xf32, #tpu.memory_space<vmem>>, vector<8x256xf32>
    tpu.vector_store %arg3[%c40_101, %c0_102], %86 {strides = array<i32>} : memref<80x256xf32, #tpu.memory_space<vmem>>, vector<8x256xf32>,
    %c224_i32_103 = arith.constant 224 : i32
    %88 = tpu.dynamic_rotate %76 by %c224_i32_103 dim 1 : vector<8x256xf32>, i32 -> vector<8x256xf32>
    %c48_104 = arith.constant 48 : index
    %c0_105 = arith.constant 0 : index
    %89 = vector.load %arg3[%c48_104, %c0_105] : memref<80x256xf32, #tpu.memory_space<vmem>>, vector<8x256xf32>
    tpu.vector_store %arg3[%c48_104, %c0_105], %88 {strides = array<i32>} : memref<80x256xf32, #tpu.memory_space<vmem>>, vector<8x256xf32>,
    %c223_i32_106 = arith.constant 223 : i32
    %90 = tpu.dynamic_rotate %76 by %c223_i32_106 dim 1 : vector<8x256xf32>, i32 -> vector<8x256xf32>
    %c56_107 = arith.constant 56 : index
    %c0_108 = arith.constant 0 : index
    %91 = vector.load %arg3[%c56_107, %c0_108] : memref<80x256xf32, #tpu.memory_space<vmem>>, vector<8x256xf32>
    tpu.vector_store %arg3[%c56_107, %c0_108], %90 {strides = array<i32>} : memref<80x256xf32, #tpu.memory_space<vmem>>, vector<8x256xf32>,
    %c222_i32_109 = arith.constant 222 : i32
    %92 = tpu.dynamic_rotate %76 by %c222_i32_109 dim 1 : vector<8x256xf32>, i32 -> vector<8x256xf32>
    %c64_110 = arith.constant 64 : index
    %c0_111 = arith.constant 0 : index
    %93 = vector.load %arg3[%c64_110, %c0_111] : memref<80x256xf32, #tpu.memory_space<vmem>>, vector<8x256xf32>
    tpu.vector_store %arg3[%c64_110, %c0_111], %92 {strides = array<i32>} : memref<80x256xf32, #tpu.memory_space<vmem>>, vector<8x256xf32>,
    %c0_112 = arith.constant 0 : index
    %c0_113 = arith.constant 0 : index
    %94 = vector.load %arg1[%c0_112, %c0_113] : memref<24x80xf32, #tpu.memory_space<vmem>>, vector<8x80xf32>
    %c0_114 = arith.constant 0 : index
    %c0_115 = arith.constant 0 : index
    %95 = vector.load %arg3[%c0_114, %c0_115] : memref<80x256xf32, #tpu.memory_space<vmem>>, vector<80x256xf32>
    %cst_116 = arith.constant dense<0.000000e+00> : vector<8x256xf32>
    %96 = tpu.matmul %94, %95, %cst_116 {dimension_numbers = #tpu.dot_dimension_numbers<[1], [0], [0], [1], [0, 0, 1, 1], [], []>} : vector<8x80xf32>, vector<80x256xf32>, vector<8x256xf32> -> vector<8x256xf32>
    %cst_117 = arith.constant 0.000000e+00 : f32
    %97 = vector.broadcast %cst_117 : f32 to vector<8x256xf32>
    %98 = arith.maximumf %96, %97 : vector<8x256xf32>
    %c0_118 = arith.constant 0 : index
    %c0_119 = arith.constant 0 : index
    %99 = vector.load %arg3[%c0_118, %c0_119] : memref<80x256xf32, #tpu.memory_space<vmem>>, vector<8x256xf32>
    tpu.vector_store %arg3[%c0_118, %c0_119], %98 {strides = array<i32>} : memref<80x256xf32, #tpu.memory_space<vmem>>, vector<8x256xf32>,
    %c255_i32_120 = arith.constant 255 : i32
    %100 = tpu.dynamic_rotate %98 by %c255_i32_120 dim 1 : vector<8x256xf32>, i32 -> vector<8x256xf32>
    %c8_121 = arith.constant 8 : index
    %c0_122 = arith.constant 0 : index
    %101 = vector.load %arg3[%c8_121, %c0_122] : memref<80x256xf32, #tpu.memory_space<vmem>>, vector<8x256xf32>
    tpu.vector_store %arg3[%c8_121, %c0_122], %100 {strides = array<i32>} : memref<80x256xf32, #tpu.memory_space<vmem>>, vector<8x256xf32>,
    %c254_i32_123 = arith.constant 254 : i32
    %102 = tpu.dynamic_rotate %98 by %c254_i32_123 dim 1 : vector<8x256xf32>, i32 -> vector<8x256xf32>
    %c16_124 = arith.constant 16 : index
    %c0_125 = arith.constant 0 : index
    %103 = vector.load %arg3[%c16_124, %c0_125] : memref<80x256xf32, #tpu.memory_space<vmem>>, vector<8x256xf32>
    tpu.vector_store %arg3[%c16_124, %c0_125], %102 {strides = array<i32>} : memref<80x256xf32, #tpu.memory_space<vmem>>, vector<8x256xf32>,
    %c240_i32_126 = arith.constant 240 : i32
    %104 = tpu.dynamic_rotate %98 by %c240_i32_126 dim 1 : vector<8x256xf32>, i32 -> vector<8x256xf32>
    %c24_127 = arith.constant 24 : index
    %c0_128 = arith.constant 0 : index
    %105 = vector.load %arg3[%c24_127, %c0_128] : memref<80x256xf32, #tpu.memory_space<vmem>>, vector<8x256xf32>
    tpu.vector_store %arg3[%c24_127, %c0_128], %104 {strides = array<i32>} : memref<80x256xf32, #tpu.memory_space<vmem>>, vector<8x256xf32>,
    %c239_i32_129 = arith.constant 239 : i32
    %106 = tpu.dynamic_rotate %98 by %c239_i32_129 dim 1 : vector<8x256xf32>, i32 -> vector<8x256xf32>
    %c32_130 = arith.constant 32 : index
    %c0_131 = arith.constant 0 : index
    %107 = vector.load %arg3[%c32_130, %c0_131] : memref<80x256xf32, #tpu.memory_space<vmem>>, vector<8x256xf32>
    tpu.vector_store %arg3[%c32_130, %c0_131], %106 {strides = array<i32>} : memref<80x256xf32, #tpu.memory_space<vmem>>, vector<8x256xf32>,
    %c238_i32_132 = arith.constant 238 : i32
    %108 = tpu.dynamic_rotate %98 by %c238_i32_132 dim 1 : vector<8x256xf32>, i32 -> vector<8x256xf32>
    %c40_133 = arith.constant 40 : index
    %c0_134 = arith.constant 0 : index
    %109 = vector.load %arg3[%c40_133, %c0_134] : memref<80x256xf32, #tpu.memory_space<vmem>>, vector<8x256xf32>
    tpu.vector_store %arg3[%c40_133, %c0_134], %108 {strides = array<i32>} : memref<80x256xf32, #tpu.memory_space<vmem>>, vector<8x256xf32>,
    %c224_i32_135 = arith.constant 224 : i32
    %110 = tpu.dynamic_rotate %98 by %c224_i32_135 dim 1 : vector<8x256xf32>, i32 -> vector<8x256xf32>
    %c48_136 = arith.constant 48 : index
    %c0_137 = arith.constant 0 : index
    %111 = vector.load %arg3[%c48_136, %c0_137] : memref<80x256xf32, #tpu.memory_space<vmem>>, vector<8x256xf32>
    tpu.vector_store %arg3[%c48_136, %c0_137], %110 {strides = array<i32>} : memref<80x256xf32, #tpu.memory_space<vmem>>, vector<8x256xf32>,
    %c223_i32_138 = arith.constant 223 : i32
    %112 = tpu.dynamic_rotate %98 by %c223_i32_138 dim 1 : vector<8x256xf32>, i32 -> vector<8x256xf32>
    %c56_139 = arith.constant 56 : index
    %c0_140 = arith.constant 0 : index
    %113 = vector.load %arg3[%c56_139, %c0_140] : memref<80x256xf32, #tpu.memory_space<vmem>>, vector<8x256xf32>
    tpu.vector_store %arg3[%c56_139, %c0_140], %112 {strides = array<i32>} : memref<80x256xf32, #tpu.memory_space<vmem>>, vector<8x256xf32>,
    %c222_i32_141 = arith.constant 222 : i32
    %114 = tpu.dynamic_rotate %98 by %c222_i32_141 dim 1 : vector<8x256xf32>, i32 -> vector<8x256xf32>
    %c64_142 = arith.constant 64 : index
    %c0_143 = arith.constant 0 : index
    %115 = vector.load %arg3[%c64_142, %c0_143] : memref<80x256xf32, #tpu.memory_space<vmem>>, vector<8x256xf32>
    tpu.vector_store %arg3[%c64_142, %c0_143], %114 {strides = array<i32>} : memref<80x256xf32, #tpu.memory_space<vmem>>, vector<8x256xf32>,
    %c8_144 = arith.constant 8 : index
    %c0_145 = arith.constant 0 : index
    %116 = vector.load %arg1[%c8_144, %c0_145] : memref<24x80xf32, #tpu.memory_space<vmem>>, vector<8x80xf32>
    %c0_146 = arith.constant 0 : index
    %c0_147 = arith.constant 0 : index
    %117 = vector.load %arg3[%c0_146, %c0_147] : memref<80x256xf32, #tpu.memory_space<vmem>>, vector<80x256xf32>
    %cst_148 = arith.constant dense<0.000000e+00> : vector<8x256xf32>
    %118 = tpu.matmul %116, %117, %cst_148 {dimension_numbers = #tpu.dot_dimension_numbers<[1], [0], [0], [1], [0, 0, 1, 1], [], []>} : vector<8x80xf32>, vector<80x256xf32>, vector<8x256xf32> -> vector<8x256xf32>
    %cst_149 = arith.constant 0.000000e+00 : f32
    %119 = vector.broadcast %cst_149 : f32 to vector<8x256xf32>
    %120 = arith.maximumf %118, %119 : vector<8x256xf32>
    %c0_150 = arith.constant 0 : index
    %c0_151 = arith.constant 0 : index
    %121 = vector.load %arg3[%c0_150, %c0_151] : memref<80x256xf32, #tpu.memory_space<vmem>>, vector<8x256xf32>
    tpu.vector_store %arg3[%c0_150, %c0_151], %120 {strides = array<i32>} : memref<80x256xf32, #tpu.memory_space<vmem>>, vector<8x256xf32>,
    %c255_i32_152 = arith.constant 255 : i32
    %122 = tpu.dynamic_rotate %120 by %c255_i32_152 dim 1 : vector<8x256xf32>, i32 -> vector<8x256xf32>
    %c8_153 = arith.constant 8 : index
    %c0_154 = arith.constant 0 : index
    %123 = vector.load %arg3[%c8_153, %c0_154] : memref<80x256xf32, #tpu.memory_space<vmem>>, vector<8x256xf32>
    tpu.vector_store %arg3[%c8_153, %c0_154], %122 {strides = array<i32>} : memref<80x256xf32, #tpu.memory_space<vmem>>, vector<8x256xf32>,
    %c254_i32_155 = arith.constant 254 : i32
    %124 = tpu.dynamic_rotate %120 by %c254_i32_155 dim 1 : vector<8x256xf32>, i32 -> vector<8x256xf32>
    %c16_156 = arith.constant 16 : index
    %c0_157 = arith.constant 0 : index
    %125 = vector.load %arg3[%c16_156, %c0_157] : memref<80x256xf32, #tpu.memory_space<vmem>>, vector<8x256xf32>
    tpu.vector_store %arg3[%c16_156, %c0_157], %124 {strides = array<i32>} : memref<80x256xf32, #tpu.memory_space<vmem>>, vector<8x256xf32>,
    %c240_i32_158 = arith.constant 240 : i32
    %126 = tpu.dynamic_rotate %120 by %c240_i32_158 dim 1 : vector<8x256xf32>, i32 -> vector<8x256xf32>
    %c24_159 = arith.constant 24 : index
    %c0_160 = arith.constant 0 : index
    %127 = vector.load %arg3[%c24_159, %c0_160] : memref<80x256xf32, #tpu.memory_space<vmem>>, vector<8x256xf32>
    tpu.vector_store %arg3[%c24_159, %c0_160], %126 {strides = array<i32>} : memref<80x256xf32, #tpu.memory_space<vmem>>, vector<8x256xf32>,
    %c239_i32_161 = arith.constant 239 : i32
    %128 = tpu.dynamic_rotate %120 by %c239_i32_161 dim 1 : vector<8x256xf32>, i32 -> vector<8x256xf32>
    %c32_162 = arith.constant 32 : index
    %c0_163 = arith.constant 0 : index
    %129 = vector.load %arg3[%c32_162, %c0_163] : memref<80x256xf32, #tpu.memory_space<vmem>>, vector<8x256xf32>
    tpu.vector_store %arg3[%c32_162, %c0_163], %128 {strides = array<i32>} : memref<80x256xf32, #tpu.memory_space<vmem>>, vector<8x256xf32>,
    %c238_i32_164 = arith.constant 238 : i32
    %130 = tpu.dynamic_rotate %120 by %c238_i32_164 dim 1 : vector<8x256xf32>, i32 -> vector<8x256xf32>
    %c40_165 = arith.constant 40 : index
    %c0_166 = arith.constant 0 : index
    %131 = vector.load %arg3[%c40_165, %c0_166] : memref<80x256xf32, #tpu.memory_space<vmem>>, vector<8x256xf32>
    tpu.vector_store %arg3[%c40_165, %c0_166], %130 {strides = array<i32>} : memref<80x256xf32, #tpu.memory_space<vmem>>, vector<8x256xf32>,
    %c224_i32_167 = arith.constant 224 : i32
    %132 = tpu.dynamic_rotate %120 by %c224_i32_167 dim 1 : vector<8x256xf32>, i32 -> vector<8x256xf32>
    %c48_168 = arith.constant 48 : index
    %c0_169 = arith.constant 0 : index
    %133 = vector.load %arg3[%c48_168, %c0_169] : memref<80x256xf32, #tpu.memory_space<vmem>>, vector<8x256xf32>
    tpu.vector_store %arg3[%c48_168, %c0_169], %132 {strides = array<i32>} : memref<80x256xf32, #tpu.memory_space<vmem>>, vector<8x256xf32>,
    %c223_i32_170 = arith.constant 223 : i32
    %134 = tpu.dynamic_rotate %120 by %c223_i32_170 dim 1 : vector<8x256xf32>, i32 -> vector<8x256xf32>
    %c56_171 = arith.constant 56 : index
    %c0_172 = arith.constant 0 : index
    %135 = vector.load %arg3[%c56_171, %c0_172] : memref<80x256xf32, #tpu.memory_space<vmem>>, vector<8x256xf32>
    tpu.vector_store %arg3[%c56_171, %c0_172], %134 {strides = array<i32>} : memref<80x256xf32, #tpu.memory_space<vmem>>, vector<8x256xf32>,
    %c222_i32_173 = arith.constant 222 : i32
    %136 = tpu.dynamic_rotate %120 by %c222_i32_173 dim 1 : vector<8x256xf32>, i32 -> vector<8x256xf32>
    %c64_174 = arith.constant 64 : index
    %c0_175 = arith.constant 0 : index
    %137 = vector.load %arg3[%c64_174, %c0_175] : memref<80x256xf32, #tpu.memory_space<vmem>>, vector<8x256xf32>
    tpu.vector_store %arg3[%c64_174, %c0_175], %136 {strides = array<i32>} : memref<80x256xf32, #tpu.memory_space<vmem>>, vector<8x256xf32>,
    %c16_176 = arith.constant 16 : index
    %c0_177 = arith.constant 0 : index
    %138 = vector.load %arg1[%c16_176, %c0_177] : memref<24x80xf32, #tpu.memory_space<vmem>>, vector<8x80xf32>
    %c0_178 = arith.constant 0 : index
    %c0_179 = arith.constant 0 : index
    %139 = vector.load %arg3[%c0_178, %c0_179] : memref<80x256xf32, #tpu.memory_space<vmem>>, vector<80x256xf32>
    %cst_180 = arith.constant dense<0.000000e+00> : vector<8x256xf32>
    %140 = tpu.matmul %138, %139, %cst_180 {dimension_numbers = #tpu.dot_dimension_numbers<[1], [0], [0], [1], [0, 0, 1, 1], [], []>} : vector<8x80xf32>, vector<80x256xf32>, vector<8x256xf32> -> vector<8x256xf32>
    %c1_181 = arith.constant 1 : index
    %c0_182 = arith.constant 0 : index
    %c0_183 = arith.constant 0 : index
    %141 = vector.load %arg2[%c1_181, %c0_182, %c0_183] : memref<2x8x256xf32, #tpu.memory_space<vmem>>, vector<1x8x256xf32>
    %142 = vector.shape_cast %141 : vector<1x8x256xf32> to vector<8x256xf32>
    %143 = vector.shape_cast %140 : vector<8x256xf32> to vector<1x8x256xf32>
    tpu.vector_store %arg2[%c1_181, %c0_182, %c0_183], %143 {strides = array<i32>} : memref<2x8x256xf32, #tpu.memory_space<vmem>>, vector<1x8x256xf32>,
    return
  }
}

</mosaic_0001>

<llo_original>
// kernel: zerolite_forward.1
$region0: #{zerolite_forward.1}
  #allocation0 [shape = 'u32[]', space=smem, size = 0x4, offset = 0x4, fixed_abs, tag = 'smem constant byte address 0x4 - core index']
  #allocation1 [shape = 'u32[144,128]{1,0:T(1,128)}', space=vmem, size = 0x12000, scoped, tag = 'internal scratch']
  #allocation2 [shape = 'f32[80,256]{1,0:T(8,128)}', space=vmem, size = 0x14000, scoped, tag = 'scratch operand']
  %s0 = inlined_call_operand.vmem [shape: f32[2,8,256], index: 0, kind: input, shape index: {}]
  %s1 = inlined_call_operand.vmem [shape: f32[24,80], index: 1, kind: input, shape index: {}]
  %s2 = inlined_call_operand.vmem [shape: f32[2,8,256], index: 2, kind: output, shape index: {}]
  %s3 = sld [smem:[#allocation0]]
  $region18: #{zerolite_forward.1} parent=0
    _
  %s5 = ssub.s32 1, %s3
  %s6 = scalar_select 0, %s5, %s3
  // Predicated region
  $region2: #{zerolite_forward.1} parent=0 // pred_check
    _
  $region3: #{zerolite_forward.1} parent=0 // pred_check_branch
    %8 = sbr.rel (0) target = $region5
  $region4: #{zerolite_forward.1} parent=0 // pred_region
    _
  $region5: #{zerolite_forward.1} parent=0 // pred_fallthru
    _
  // Predicated region
  $region6: #{zerolite_forward.1} parent=0 // pred_check
    _
  $region7: #{zerolite_forward.1} parent=0 // pred_check_branch
    %10 = sbr.rel (0) target = $region9
  $region8: #{zerolite_forward.1} parent=0 // pred_region
    _
  $region9: #{zerolite_forward.1} parent=0 // pred_fallthru
    _
  %v11 = vlaneseq
  %v12 = vshrl.u32 %v11, 7
  %vm13 = vcmp.eq.s32.totalorder %v12, 0
  %v14 = vsel %vm13, 1, 0
  %v15 = vcvt.s32.f32 %v14
  %16 = vst [vmem:[#allocation2 + $0x90] sm:$0xff] %v15
  %17 = vst [vmem:[#allocation2 + $0x98] sm:$0xff] %v15
  %v18 = vld [vmem:[%s0] sm:$0xff]
  %v19 = vld [vmem:[%s0 + $0x8] sm:$0xff]
  %20 = vst [vmem:[#allocation2] sm:$0xff] %v18
  %21 = vst [vmem:[#allocation2 + $0x8] sm:$0xff] %v19
  %22 = vrot.lane.b32.xlu0 %v18, 127
  %v23 = vpop.permute.xlu0 %22
  %24 = vrot.lane.b32.xlu0 %v19, 127
  %v25 = vpop.permute.xlu0 %24
  %v26 = vlaneseq
  %v27 = vand.u32 %v26, 127
  %vm28 = vcmp.lt.s32.totalorder %v27, 127
  %v29 = vsel %vm28, %v23, %v25
  %v30 = vsel %vm28, %v25, %v23
  %31 = vst [vmem:[#allocation2 + $0x10] sm:$0xff] %v29
  %32 = vst [vmem:[#allocation2 + $0x18] sm:$0xff] %v30
  %33 = vrot.lane.b32.xlu0 %v18, 126
  %v34 = vpop.permute.xlu0 %33
  %35 = vrot.lane.b32.xlu0 %v19, 126
  %v36 = vpop.permute.xlu0 %35
  %vm37 = vcmp.lt.s32.totalorder %v27, 126
  %v38 = vsel %vm37, %v34, %v36
  %v39 = vsel %vm37, %v36, %v34
  %40 = vst [vmem:[#allocation2 + $0x20] sm:$0xff] %v38
  %41 = vst [vmem:[#allocation2 + $0x28] sm:$0xff] %v39
  %42 = vrot.lane.b32.xlu0 %v18, 112
  %v43 = vpop.permute.xlu0 %42
  %44 = vrot.lane.b32.xlu0 %v19, 112
  %v45 = vpop.permute.xlu0 %44
  %vm46 = vcmp.lt.s32.totalorder %v27, 112
  %v47 = vsel %vm46, %v43, %v45
  %v48 = vsel %vm46, %v45, %v43
  %49 = vst [vmem:[#allocation2 + $0x30] sm:$0xff] %v47
  %50 = vst [vmem:[#allocation2 + $0x38] sm:$0xff] %v48
  %51 = vrot.lane.b32.xlu0 %v18, 111
  %v52 = vpop.permute.xlu0 %51
  %53 = vrot.lane.b32.xlu0 %v19, 111
  %v54 = vpop.permute.xlu0 %53
  %vm55 = vcmp.lt.s32.totalorder %v27, 111
  %v56 = vsel %vm55, %v52, %v54
  %v57 = vsel %vm55, %v54, %v52
  %58 = vst [vmem:[#allocation2 + $0x40] sm:$0xff] %v56
  %59 = vst [vmem:[#allocation2 + $0x48] sm:$0xff] %v57
  %60 = vrot.lane.b32.xlu0 %v18, 110
  %v61 = vpop.permute.xlu0 %60
  %62 = vrot.lane.b32.xlu0 %v19, 110
  %v63 = vpop.permute.xlu0 %62
  %vm64 = vcmp.lt.s32.totalorder %v27, 110
  %v65 = vsel %vm64, %v61, %v63
  %v66 = vsel %vm64, %v63, %v61
  %67 = vst [vmem:[#allocation2 + $0x50] sm:$0xff] %v65
  %68 = vst [vmem:[#allocation2 + $0x58] sm:$0xff] %v66
  %69 = vrot.lane.b32.xlu0 %v18, 96
  %v70 = vpop.permute.xlu0 %69
  %71 = vrot.lane.b32.xlu0 %v19, 96
  %v72 = vpop.permute.xlu0 %71
  %vm73 = vcmp.lt.s32.totalorder %v27, 96
  %v74 = vsel %vm73, %v70, %v72
  %v75 = vsel %vm73, %v72, %v70
  %76 = vst [vmem:[#allocation2 + $0x60] sm:$0xff] %v74
  %77 = vst [vmem:[#allocation2 + $0x68] sm:$0xff] %v75
  %78 = vrot.lane.b32.xlu0 %v18, 95
  %v79 = vpop.permute.xlu0 %78
  %80 = vrot.lane.b32.xlu0 %v19, 95
  %v81 = vpop.permute.xlu0 %80
  %vm82 = vcmp.lt.s32.totalorder %v27, 95
  %v83 = vsel %vm82, %v79, %v81
  %v84 = vsel %vm82, %v81, %v79
  %85 = vst [vmem:[#allocation2 + $0x70] sm:$0xff] %v83
  %86 = vst [vmem:[#allocation2 + $0x78] sm:$0xff] %v84
  %87 = vrot.lane.b32.xlu0 %v18, 94
  %v88 = vpop.permute.xlu0 %87
  %89 = vrot.lane.b32.xlu0 %v19, 94
  %v90 = vpop.permute.xlu0 %89
  %vm91 = vcmp.lt.s32.totalorder %v27, 94
  %v92 = vsel %vm91, %v88, %v90
  %v93 = vsel %vm91, %v90, %v88
  %94 = vst [vmem:[#allocation2 + $0x80] sm:$0xff] %v92
  %95 = vst [vmem:[#allocation2 + $0x88] sm:$0xff] %v93
  %v96 = vld [vmem:[%s1] sm:$0xff]
  %v97 = vld [vmem:[#allocation2] sm:$0xff]
  %v98 = vld [vmem:[#allocation2 + $0x8] sm:$0xff]
  %v99 = vld [vmem:[#allocation2 + $0x10] sm:$0xff]
  %v100 = vld [vmem:[#allocation2 + $0x18] sm:$0xff]
  %v101 = vld [vmem:[#allocation2 + $0x20] sm:$0xff]
  %v102 = vld [vmem:[#allocation2 + $0x28] sm:$0xff]
  %v103 = vld [vmem:[#allocation2 + $0x30] sm:$0xff]
  %v104 = vld [vmem:[#allocation2 + $0x38] sm:$0xff]
  %v105 = vld [vmem:[#allocation2 + $0x40] sm:$0xff]
  %v106 = vld [vmem:[#allocation2 + $0x48] sm:$0xff]
  %v107 = vld [vmem:[#allocation2 + $0x50] sm:$0xff]
  %v108 = vld [vmem:[#allocation2 + $0x58] sm:$0xff]
  %v109 = vld [vmem:[#allocation2 + $0x60] sm:$0xff]
  %v110 = vld [vmem:[#allocation2 + $0x68] sm:$0xff]
  %v111 = vld [vmem:[#allocation2 + $0x70] sm:$0xff]
  %v112 = vld [vmem:[#allocation2 + $0x78] sm:$0xff]
  %v113 = vld [vmem:[#allocation2 + $0x80] sm:$0xff]
  %v114 = vld [vmem:[#allocation2 + $0x88] sm:$0xff]
  %v115 = vld [vmem:[#allocation2 + $0x90] sm:$0xff]
  %v116 = vld [vmem:[#allocation2 + $0x98] sm:$0xff]
  %vm117 = vcmask 654336
  %v119 = vsel %vm117, %v96, 0
  %121 = vmatprep.subr.mxu0 %v98
  %122 = vmatpush1.msra.mxu0 %v97
  %123 = vmatprep.subr.mxu0 %v100
  %124 = vmatpush1.msra.mxu0 %v99
  %125 = vmatprep.subr.mxu0 %v102
  %126 = vmatpush1.msra.mxu0 %v101
  %127 = vmatprep.subr.mxu0 %v104
  %128 = vmatpush1.msra.mxu0 %v103
  %129 = vmatprep.subr.mxu0 %v106
  %130 = vmatpush1.msra.mxu0 %v105
  %131 = vmatprep.subr.mxu0 %v108
  %132 = vmatpush1.msra.mxu0 %v107
  %133 = vmatprep.subr.mxu0 %v110
  %134 = vmatpush1.msra.mxu0 %v109
  %135 = vmatprep.subr.mxu0 %v112
  %136 = vmatpush1.msra.mxu0 %v111
  %137 = vmatprep.subr.mxu0 %v114
  %138 = vmatpush1.msra.mxu0 %v113
  %139 = vmatprep.subr.mxu0 %v116
  %140 = vmatpush1.msra.mxu0 %v115
  %141 = vmatprep.subr.mxu0 0.0
  %142 = vmatpush1.msra.mxu0 0.0
  %143 = vmatprep.subr.mxu0 0.0
  %144 = vmatpush1.msra.mxu0 0.0
  %145 = vmatprep.subr.mxu0 0.0
  %146 = vmatpush1.msra.mxu0 0.0
  %147 = vmatprep.subr.mxu0 0.0
  %148 = vmatpush1.msra.mxu0 0.0
  %149 = vmatprep.subr.mxu0 0.0
  %150 = vmatpush1.msra.mxu0 0.0
  %151 = vmatprep.subr.mxu0 0.0
  %152 = vmatpush1.msra.mxu0 0.0
  %153 = vmatprep.subr.mxu0 0.0
  %154 = vmatpush1.msra.mxu0 0.0
  %155 = vmatprep.subr.mxu0 0.0
  %156 = vmatpush1.msra.mxu0 0.0
  %157 = vmatprep.subr.mxu0 0.0
  %158 = vmatpush1.msra.mxu0 0.0
  %159 = vmatprep.subr.mxu0 0.0
  %160 = vmatpush1.msra.mxu0 0.0
  %161 = vmatprep.subr.mxu0 0.0
  %162 = vmatpush1.msra.mxu0 0.0
  %163 = vmatprep.subr.mxu0 0.0
  %164 = vmatpush1.msra.mxu0 0.0
  %165 = vmatprep.subr.mxu0 0.0
  %166 = vmatpush1.msra.mxu0 0.0
  %167 = vmatprep.subr.mxu0 0.0
  %168 = vmatpush1.msra.mxu0 0.0
  %169 = vmatprep.subr.mxu0 0.0
  %170 = vmatpush1.msra.mxu0 0.0
  %171 = vmatprep.subr.mxu0 0.0
  %172 = vmatpush1.msra.mxu0 0.0
  %173 = vmatprep.subr.mxu0 0.0
  %174 = vmatpush1.msra.mxu0 0.0
  %175 = vmatprep.subr.mxu0 0.0
  %176 = vmatpush1.msra.mxu0 0.0
  %177 = vmatprep.subr.mxu0 0.0
  %178 = vmatpush1.msra.mxu0 0.0
  %179 = vmatprep.subr.mxu0 0.0
  %180 = vmatpush1.msra.mxu0 0.0
  %181 = vmatprep.subr.mxu0 0.0
  %182 = vmatpush1.msra.mxu0 0.0
  %183 = vmatprep.subr.mxu0 0.0
  %184 = vmatpush1.msra.mxu0 0.0
  %185 = vmatprep.mubr.f32.mxu0 0.0
  %186 = vmatmul.mubr.f32.gmra.mrb[0].mxu0 %v119
  %v187 = vpop.f32.mrb[0].mxu0
  %v188 = vadd.f32 0.0, %v187
  %v189 = vpop.f32.mrb[0].mxu0
  %v190 = vadd.f32 0.0, %v189
  %191 = vdwg.mxu0
  %v192 = vmax.f32 %v188, 0.0
  %v193 = vmax.f32 %v190, 0.0
  %194 = vst [vmem:[#allocation2] sm:$0xff] %v192
  %195 = vst [vmem:[#allocation2 + $0x8] sm:$0xff] %v193
  %196 = vrot.lane.b32.xlu0 %v192, 127
  %v197 = vpop.permute.xlu0 %196
  %198 = vrot.lane.b32.xlu0 %v193, 127
  %v199 = vpop.permute.xlu0 %198
  %v200 = vsel %vm28, %v197, %v199
  %v201 = vsel %vm28, %v199, %v197
  %202 = vst [vmem:[#allocation2 + $0x10] sm:$0xff] %v200
  %203 = vst [vmem:[#allocation2 + $0x18] sm:$0xff] %v201
  %204 = vrot.lane.b32.xlu0 %v192, 126
  %v205 = vpop.permute.xlu0 %204
  %206 = vrot.lane.b32.xlu0 %v193, 126
  %v207 = vpop.permute.xlu0 %206
  %v208 = vsel %vm37, %v205, %v207
  %v209 = vsel %vm37, %v207, %v205
  %210 = vst [vmem:[#allocation2 + $0x20] sm:$0xff] %v208
  %211 = vst [vmem:[#allocation2 + $0x28] sm:$0xff] %v209
  %212 = vrot.lane.b32.xlu0 %v192, 112
  %v213 = vpop.permute.xlu0 %212
  %214 = vrot.lane.b32.xlu0 %v193, 112
  %v215 = vpop.permute.xlu0 %214
  %v216 = vsel %vm46, %v213, %v215
  %v217 = vsel %vm46, %v215, %v213
  %218 = vst [vmem:[#allocation2 + $0x30] sm:$0xff] %v216
  %219 = vst [vmem:[#allocation2 + $0x38] sm:$0xff] %v217
  %220 = vrot.lane.b32.xlu0 %v192, 111
  %v221 = vpop.permute.xlu0 %220
  %222 = vrot.lane.b32.xlu0 %v193, 111
  %v223 = vpop.permute.xlu0 %222
  %v224 = vsel %vm55, %v221, %v223
  %v225 = vsel %vm55, %v223, %v221
  %226 = vst [vmem:[#allocation2 + $0x40] sm:$0xff] %v224
  %227 = vst [vmem:[#allocation2 + $0x48] sm:$0xff] %v225
  %228 = vrot.lane.b32.xlu0 %v192, 110
  %v229 = vpop.permute.xlu0 %228
  %230 = vrot.lane.b32.xlu0 %v193, 110
  %v231 = vpop.permute.xlu0 %230
  %v232 = vsel %vm64, %v229, %v231
  %v233 = vsel %vm64, %v231, %v229
  %234 = vst [vmem:[#allocation2 + $0x50] sm:$0xff] %v232
  %235 = vst [vmem:[#allocation2 + $0x58] sm:$0xff] %v233
  %236 = vrot.lane.b32.xlu0 %v192, 96
  %v237 = vpop.permute.xlu0 %236
  %238 = vrot.lane.b32.xlu0 %v193, 96
  %v239 = vpop.permute.xlu0 %238
  %v240 = vsel %vm73, %v237, %v239
  %v241 = vsel %vm73, %v239, %v237
  %242 = vst [vmem:[#allocation2 + $0x60] sm:$0xff] %v240
  %243 = vst [vmem:[#allocation2 + $0x68] sm:$0xff] %v241
  %244 = vrot.lane.b32.xlu0 %v192, 95
  %v245 = vpop.permute.xlu0 %244
  %246 = vrot.lane.b32.xlu0 %v193, 95
  %v247 = vpop.permute.xlu0 %246
  %v248 = vsel %vm82, %v245, %v247
  %v249 = vsel %vm82, %v247, %v245
  %250 = vst [vmem:[#allocation2 + $0x70] sm:$0xff] %v248
  %251 = vst [vmem:[#allocation2 + $0x78] sm:$0xff] %v249
  %252 = vrot.lane.b32.xlu0 %v192, 94
  %v253 = vpop.permute.xlu0 %252
  %254 = vrot.lane.b32.xlu0 %v193, 94
  %v255 = vpop.permute.xlu0 %254
  %v256 = vsel %vm91, %v253, %v255
  %v257 = vsel %vm91, %v255, %v253
  %258 = vst [vmem:[#allocation2 + $0x80] sm:$0xff] %v256
  %259 = vst [vmem:[#allocation2 + $0x88] sm:$0xff] %v257
  %v260 = vld [vmem:[%s1 + $0x8] sm:$0xff]
  %v261 = vld [vmem:[#allocation2] sm:$0xff]
  %v262 = vld [vmem:[#allocation2 + $0x8] sm:$0xff]
  %v263 = vld [vmem:[#allocation2 + $0x10] sm:$0xff]
  %v264 = vld [vmem:[#allocation2 + $0x18] sm:$0xff]
  %v265 = vld [vmem:[#allocation2 + $0x20] sm:$0xff]
  %v266 = vld [vmem:[#allocation2 + $0x28] sm:$0xff]
  %v267 = vld [vmem:[#allocation2 + $0x30] sm:$0xff]
  %v268 = vld [vmem:[#allocation2 + $0x38] sm:$0xff]
  %v269 = vld [vmem:[#allocation2 + $0x40] sm:$0xff]
  %v270 = vld [vmem:[#allocation2 + $0x48] sm:$0xff]
  %v271 = vld [vmem:[#allocation2 + $0x50] sm:$0xff]
  %v272 = vld [vmem:[#allocation2 + $0x58] sm:$0xff]
  %v273 = vld [vmem:[#allocation2 + $0x60] sm:$0xff]
  %v274 = vld [vmem:[#allocation2 + $0x68] sm:$0xff]
  %v275 = vld [vmem:[#allocation2 + $0x70] sm:$0xff]
  %v276 = vld [vmem:[#allocation2 + $0x78] sm:$0xff]
  %v277 = vld [vmem:[#allocation2 + $0x80] sm:$0xff]
  %v278 = vld [vmem:[#allocation2 + $0x88] sm:$0xff]
  %v279 = vld [vmem:[#allocation2 + $0x90] sm:$0xff]
  %v280 = vld [vmem:[#allocation2 + $0x98] sm:$0xff]
  %v282 = vsel %vm117, %v260, 0
  %284 = vmatprep.subr.mxu0 %v262
  %285 = vmatpush1.msra.mxu0 %v261
  %286 = vmatprep.subr.mxu0 %v264
  %287 = vmatpush1.msra.mxu0 %v263
  %288 = vmatprep.subr.mxu0 %v266
  %289 = vmatpush1.msra.mxu0 %v265
  %290 = vmatprep.subr.mxu0 %v268
  %291 = vmatpush1.msra.mxu0 %v267
  %292 = vmatprep.subr.mxu0 %v270
  %293 = vmatpush1.msra.mxu0 %v269
  %294 = vmatprep.subr.mxu0 %v272
  %295 = vmatpush1.msra.mxu0 %v271
  %296 = vmatprep.subr.mxu0 %v274
  %297 = vmatpush1.msra.mxu0 %v273
  %298 = vmatprep.subr.mxu0 %v276
  %299 = vmatpush1.msra.mxu0 %v275
  %300 = vmatprep.subr.mxu0 %v278
  %301 = vmatpush1.msra.mxu0 %v277
  %302 = vmatprep.subr.mxu0 %v280
  %303 = vmatpush1.msra.mxu0 %v279
  %304 = vmatprep.subr.mxu0 0.0
  %305 = vmatpush1.msra.mxu0 0.0
  %306 = vmatprep.subr.mxu0 0.0
  %307 = vmatpush1.msra.mxu0 0.0
  %308 = vmatprep.subr.mxu0 0.0
  %309 = vmatpush1.msra.mxu0 0.0
  %310 = vmatprep.subr.mxu0 0.0
  %311 = vmatpush1.msra.mxu0 0.0
  %312 = vmatprep.subr.mxu0 0.0
  %313 = vmatpush1.msra.mxu0 0.0
  %314 = vmatprep.subr.mxu0 0.0
  %315 = vmatpush1.msra.mxu0 0.0
  %316 = vmatprep.subr.mxu0 0.0
  %317 = vmatpush1.msra.mxu0 0.0
  %318 = vmatprep.subr.mxu0 0.0
  %319 = vmatpush1.msra.mxu0 0.0
  %320 = vmatprep.subr.mxu0 0.0
  %321 = vmatpush1.msra.mxu0 0.0
  %322 = vmatprep.subr.mxu0 0.0
  %323 = vmatpush1.msra.mxu0 0.0
  %324 = vmatprep.subr.mxu0 0.0
  %325 = vmatpush1.msra.mxu0 0.0
  %326 = vmatprep.subr.mxu0 0.0
  %327 = vmatpush1.msra.mxu0 0.0
  %328 = vmatprep.subr.mxu0 0.0
  %329 = vmatpush1.msra.mxu0 0.0
  %330 = vmatprep.subr.mxu0 0.0
  %331 = vmatpush1.msra.mxu0 0.0
  %332 = vmatprep.subr.mxu0 0.0
  %333 = vmatpush1.msra.mxu0 0.0
  %334 = vmatprep.subr.mxu0 0.0
  %335 = vmatpush1.msra.mxu0 0.0
  %336 = vmatprep.subr.mxu0 0.0
  %337 = vmatpush1.msra.mxu0 0.0
  %338 = vmatprep.subr.mxu0 0.0
  %339 = vmatpush1.msra.mxu0 0.0
  %340 = vmatprep.subr.mxu0 0.0
  %341 = vmatpush1.msra.mxu0 0.0
  %342 = vmatprep.subr.mxu0 0.0
  %343 = vmatpush1.msra.mxu0 0.0
  %344 = vmatprep.subr.mxu0 0.0
  %345 = vmatpush1.msra.mxu0 0.0
  %346 = vmatprep.subr.mxu0 0.0
  %347 = vmatpush1.msra.mxu0 0.0
  %348 = vmatprep.mubr.f32.mxu0 0.0
  %349 = vmatmul.mubr.f32.gmra.mrb[0].mxu0 %v282
  %v350 = vpop.f32.mrb[0].mxu0
  %v351 = vadd.f32 0.0, %v350
  %v352 = vpop.f32.mrb[0].mxu0
  %v353 = vadd.f32 0.0, %v352
  %354 = vdwg.mxu0
  %v355 = vmax.f32 %v351, 0.0
  %v356 = vmax.f32 %v353, 0.0
  %357 = vst [vmem:[#allocation2] sm:$0xff] %v355
  %358 = vst [vmem:[#allocation2 + $0x8] sm:$0xff] %v356
  %359 = vrot.lane.b32.xlu0 %v355, 127
  %v360 = vpop.permute.xlu0 %359
  %361 = vrot.lane.b32.xlu0 %v356, 127
  %v362 = vpop.permute.xlu0 %361
  %v363 = vsel %vm28, %v360, %v362
  %v364 = vsel %vm28, %v362, %v360
  %365 = vst [vmem:[#allocation2 + $0x10] sm:$0xff] %v363
  %366 = vst [vmem:[#allocation2 + $0x18] sm:$0xff] %v364
  %367 = vrot.lane.b32.xlu0 %v355, 126
  %v368 = vpop.permute.xlu0 %367
  %369 = vrot.lane.b32.xlu0 %v356, 126
  %v370 = vpop.permute.xlu0 %369
  %v371 = vsel %vm37, %v368, %v370
  %v372 = vsel %vm37, %v370, %v368
  %373 = vst [vmem:[#allocation2 + $0x20] sm:$0xff] %v371
  %374 = vst [vmem:[#allocation2 + $0x28] sm:$0xff] %v372
  %375 = vrot.lane.b32.xlu0 %v355, 112
  %v376 = vpop.permute.xlu0 %375
  %377 = vrot.lane.b32.xlu0 %v356, 112
  %v378 = vpop.permute.xlu0 %377
  %v379 = vsel %vm46, %v376, %v378
  %v380 = vsel %vm46, %v378, %v376
  %381 = vst [vmem:[#allocation2 + $0x30] sm:$0xff] %v379
  %382 = vst [vmem:[#allocation2 + $0x38] sm:$0xff] %v380
  %383 = vrot.lane.b32.xlu0 %v355, 111
  %v384 = vpop.permute.xlu0 %383
  %385 = vrot.lane.b32.xlu0 %v356, 111
  %v386 = vpop.permute.xlu0 %385
  %v387 = vsel %vm55, %v384, %v386
  %v388 = vsel %vm55, %v386, %v384
  %389 = vst [vmem:[#allocation2 + $0x40] sm:$0xff] %v387
  %390 = vst [vmem:[#allocation2 + $0x48] sm:$0xff] %v388
  %391 = vrot.lane.b32.xlu0 %v355, 110
  %v392 = vpop.permute.xlu0 %391
  %393 = vrot.lane.b32.xlu0 %v356, 110
  %v394 = vpop.permute.xlu0 %393
  %v395 = vsel %vm64, %v392, %v394
  %v396 = vsel %vm64, %v394, %v392
  %397 = vst [vmem:[#allocation2 + $0x50] sm:$0xff] %v395
  %398 = vst [vmem:[#allocation2 + $0x58] sm:$0xff] %v396
  %399 = vrot.lane.b32.xlu0 %v355, 96
  %v400 = vpop.permute.xlu0 %399
  %401 = vrot.lane.b32.xlu0 %v356, 96
  %v402 = vpop.permute.xlu0 %401
  %v403 = vsel %vm73, %v400, %v402
  %v404 = vsel %vm73, %v402, %v400
  %405 = vst [vmem:[#allocation2 + $0x60] sm:$0xff] %v403
  %406 = vst [vmem:[#allocation2 + $0x68] sm:$0xff] %v404
  %407 = vrot.lane.b32.xlu0 %v355, 95
  %v408 = vpop.permute.xlu0 %407
  %409 = vrot.lane.b32.xlu0 %v356, 95
  %v410 = vpop.permute.xlu0 %409
  %v411 = vsel %vm82, %v408, %v410
  %v412 = vsel %vm82, %v410, %v408
  %413 = vst [vmem:[#allocation2 + $0x70] sm:$0xff] %v411
  %414 = vst [vmem:[#allocation2 + $0x78] sm:$0xff] %v412
  %415 = vrot.lane.b32.xlu0 %v355, 94
  %v416 = vpop.permute.xlu0 %415
  %417 = vrot.lane.b32.xlu0 %v356, 94
  %v418 = vpop.permute.xlu0 %417
  %v419 = vsel %vm91, %v416, %v418
  %v420 = vsel %vm91, %v418, %v416
  %421 = vst [vmem:[#allocation2 + $0x80] sm:$0xff] %v419
  %422 = vst [vmem:[#allocation2 + $0x88] sm:$0xff] %v420
  %v423 = vld [vmem:[%s1 + $0x10] sm:$0xff]
  %v424 = vld [vmem:[#allocation2] sm:$0xff]
  %v425 = vld [vmem:[#allocation2 + $0x8] sm:$0xff]
  %v426 = vld [vmem:[#allocation2 + $0x10] sm:$0xff]
  %v427 = vld [vmem:[#allocation2 + $0x18] sm:$0xff]
  %v428 = vld [vmem:[#allocation2 + $0x20] sm:$0xff]
  %v429 = vld [vmem:[#allocation2 + $0x28] sm:$0xff]
  %v430 = vld [vmem:[#allocation2 + $0x30] sm:$0xff]
  %v431 = vld [vmem:[#allocation2 + $0x38] sm:$0xff]
  %v432 = vld [vmem:[#allocation2 + $0x40] sm:$0xff]
  %v433 = vld [vmem:[#allocation2 + $0x48] sm:$0xff]
  %v434 = vld [vmem:[#allocation2 + $0x50] sm:$0xff]
  %v435 = vld [vmem:[#allocation2 + $0x58] sm:$0xff]
  %v436 = vld [vmem:[#allocation2 + $0x60] sm:$0xff]
  %v437 = vld [vmem:[#allocation2 + $0x68] sm:$0xff]
  %v438 = vld [vmem:[#allocation2 + $0x70] sm:$0xff]
  %v439 = vld [vmem:[#allocation2 + $0x78] sm:$0xff]
  %v440 = vld [vmem:[#allocation2 + $0x80] sm:$0xff]
  %v441 = vld [vmem:[#allocation2 + $0x88] sm:$0xff]
  %v442 = vld [vmem:[#allocation2 + $0x90] sm:$0xff]
  %v443 = vld [vmem:[#allocation2 + $0x98] sm:$0xff]
  %v445 = vsel %vm117, %v423, 0
  %447 = vmatprep.subr.mxu0 %v425
  %448 = vmatpush1.msra.mxu0 %v424
  %449 = vmatprep.subr.mxu0 %v427
  %450 = vmatpush1.msra.mxu0 %v426
  %451 = vmatprep.subr.mxu0 %v429
  %452 = vmatpush1.msra.mxu0 %v428
  %453 = vmatprep.subr.mxu0 %v431
  %454 = vmatpush1.msra.mxu0 %v430
  %455 = vmatprep.subr.mxu0 %v433
  %456 = vmatpush1.msra.mxu0 %v432
  %457 = vmatprep.subr.mxu0 %v435
  %458 = vmatpush1.msra.mxu0 %v434
  %459 = vmatprep.subr.mxu0 %v437
  %460 = vmatpush1.msra.mxu0 %v436
  %461 = vmatprep.subr.mxu0 %v439
  %462 = vmatpush1.msra.mxu0 %v438
  %463 = vmatprep.subr.mxu0 %v441
  %464 = vmatpush1.msra.mxu0 %v440
  %465 = vmatprep.subr.mxu0 %v443
  %466 = vmatpush1.msra.mxu0 %v442
  %467 = vmatprep.subr.mxu0 0.0
  %468 = vmatpush1.msra.mxu0 0.0
  %469 = vmatprep.subr.mxu0 0.0
  %470 = vmatpush1.msra.mxu0 0.0
  %471 = vmatprep.subr.mxu0 0.0
  %472 = vmatpush1.msra.mxu0 0.0
  %473 = vmatprep.subr.mxu0 0.0
  %474 = vmatpush1.msra.mxu0 0.0
  %475 = vmatprep.subr.mxu0 0.0
  %476 = vmatpush1.msra.mxu0 0.0
  %477 = vmatprep.subr.mxu0 0.0
  %478 = vmatpush1.msra.mxu0 0.0
  %479 = vmatprep.subr.mxu0 0.0
  %480 = vmatpush1.msra.mxu0 0.0
  %481 = vmatprep.subr.mxu0 0.0
  %482 = vmatpush1.msra.mxu0 0.0
  %483 = vmatprep.subr.mxu0 0.0
  %484 = vmatpush1.msra.mxu0 0.0
  %485 = vmatprep.subr.mxu0 0.0
  %486 = vmatpush1.msra.mxu0 0.0
  %487 = vmatprep.subr.mxu0 0.0
  %488 = vmatpush1.msra.mxu0 0.0
  %489 = vmatprep.subr.mxu0 0.0
  %490 = vmatpush1.msra.mxu0 0.0
  %491 = vmatprep.subr.mxu0 0.0
  %492 = vmatpush1.msra.mxu0 0.0
  %493 = vmatprep.subr.mxu0 0.0
  %494 = vmatpush1.msra.mxu0 0.0
  %495 = vmatprep.subr.mxu0 0.0
  %496 = vmatpush1.msra.mxu0 0.0
  %497 = vmatprep.subr.mxu0 0.0
  %498 = vmatpush1.msra.mxu0 0.0
  %499 = vmatprep.subr.mxu0 0.0
  %500 = vmatpush1.msra.mxu0 0.0
  %501 = vmatprep.subr.mxu0 0.0
  %502 = vmatpush1.msra.mxu0 0.0
  %503 = vmatprep.subr.mxu0 0.0
  %504 = vmatpush1.msra.mxu0 0.0
  %505 = vmatprep.subr.mxu0 0.0
  %506 = vmatpush1.msra.mxu0 0.0
  %507 = vmatprep.subr.mxu0 0.0
  %508 = vmatpush1.msra.mxu0 0.0
  %509 = vmatprep.subr.mxu0 0.0
  %510 = vmatpush1.msra.mxu0 0.0
  %511 = vmatprep.mubr.f32.mxu0 0.0
  %512 = vmatmul.mubr.f32.gmra.mrb[0].mxu0 %v445
  %v513 = vpop.f32.mrb[0].mxu0
  %v514 = vadd.f32 0.0, %v513
  %v515 = vpop.f32.mrb[0].mxu0
  %v516 = vadd.f32 0.0, %v515
  %517 = vdwg.mxu0
  %518 = vst [vmem:[%s2] sm:$0xff] %v514
  %519 = vst [vmem:[%s2 + $0x8] sm:$0xff] %v516
  %s520 = scalar_lea.vmem %s0, 16
  %v521 = vld [vmem:[%s520] sm:$0xff]
  %v522 = vld [vmem:[%s520 + $0x8] sm:$0xff]
  %523 = vst [vmem:[#allocation2] sm:$0xff] %v521
  %524 = vst [vmem:[#allocation2 + $0x8] sm:$0xff] %v522
  %525 = vrot.lane.b32.xlu0 %v521, 127
  %v526 = vpop.permute.xlu0 %525
  %527 = vrot.lane.b32.xlu0 %v522, 127
  %v528 = vpop.permute.xlu0 %527
  %v529 = vsel %vm28, %v526, %v528
  %v530 = vsel %vm28, %v528, %v526
  %531 = vst [vmem:[#allocation2 + $0x10] sm:$0xff] %v529
  %532 = vst [vmem:[#allocation2 + $0x18] sm:$0xff] %v530
  %533 = vrot.lane.b32.xlu0 %v521, 126
  %v534 = vpop.permute.xlu0 %533
  %535 = vrot.lane.b32.xlu0 %v522, 126
  %v536 = vpop.permute.xlu0 %535
  %v537 = vsel %vm37, %v534, %v536
  %v538 = vsel %vm37, %v536, %v534
  %539 = vst [vmem:[#allocation2 + $0x20] sm:$0xff] %v537
  %540 = vst [vmem:[#allocation2 + $0x28] sm:$0xff] %v538
  %541 = vrot.lane.b32.xlu0 %v521, 112
  %v542 = vpop.permute.xlu0 %541
  %543 = vrot.lane.b32.xlu0 %v522, 112
  %v544 = vpop.permute.xlu0 %543
  %v545 = vsel %vm46, %v542, %v544
  %v546 = vsel %vm46, %v544, %v542
  %547 = vst [vmem:[#allocation2 + $0x30] sm:$0xff] %v545
  %548 = vst [vmem:[#allocation2 + $0x38] sm:$0xff] %v546
  %549 = vrot.lane.b32.xlu0 %v521, 111
  %v550 = vpop.permute.xlu0 %549
  %551 = vrot.lane.b32.xlu0 %v522, 111
  %v552 = vpop.permute.xlu0 %551
  %v553 = vsel %vm55, %v550, %v552
  %v554 = vsel %vm55, %v552, %v550
  %555 = vst [vmem:[#allocation2 + $0x40] sm:$0xff] %v553
  %556 = vst [vmem:[#allocation2 + $0x48] sm:$0xff] %v554
  %557 = vrot.lane.b32.xlu0 %v521, 110
  %v558 = vpop.permute.xlu0 %557
  %559 = vrot.lane.b32.xlu0 %v522, 110
  %v560 = vpop.permute.xlu0 %559
  %v561 = vsel %vm64, %v558, %v560
  %v562 = vsel %vm64, %v560, %v558
  %563 = vst [vmem:[#allocation2 + $0x50] sm:$0xff] %v561
  %564 = vst [vmem:[#allocation2 + $0x58] sm:$0xff] %v562
  %565 = vrot.lane.b32.xlu0 %v521, 96
  %v566 = vpop.permute.xlu0 %565
  %567 = vrot.lane.b32.xlu0 %v522, 96
  %v568 = vpop.permute.xlu0 %567
  %v569 = vsel %vm73, %v566, %v568
  %v570 = vsel %vm73, %v568, %v566
  %571 = vst [vmem:[#allocation2 + $0x60] sm:$0xff] %v569
  %572 = vst [vmem:[#allocation2 + $0x68] sm:$0xff] %v570
  %573 = vrot.lane.b32.xlu0 %v521, 95
  %v574 = vpop.permute.xlu0 %573
  %575 = vrot.lane.b32.xlu0 %v522, 95
  %v576 = vpop.permute.xlu0 %575
  %v577 = vsel %vm82, %v574, %v576
  %v578 = vsel %vm82, %v576, %v574
  %579 = vst [vmem:[#allocation2 + $0x70] sm:$0xff] %v577
  %580 = vst [vmem:[#allocation2 + $0x78] sm:$0xff] %v578
  %581 = vrot.lane.b32.xlu0 %v521, 94
  %v582 = vpop.permute.xlu0 %581
  %583 = vrot.lane.b32.xlu0 %v522, 94
  %v584 = vpop.permute.xlu0 %583
  %v585 = vsel %vm91, %v582, %v584
  %v586 = vsel %vm91, %v584, %v582
  %587 = vst [vmem:[#allocation2 + $0x80] sm:$0xff] %v585
  %588 = vst [vmem:[#allocation2 + $0x88] sm:$0xff] %v586
  %v589 = vld [vmem:[%s1] sm:$0xff]
  %v590 = vld [vmem:[#allocation2] sm:$0xff]
  %v591 = vld [vmem:[#allocation2 + $0x8] sm:$0xff]
  %v592 = vld [vmem:[#allocation2 + $0x10] sm:$0xff]
  %v593 = vld [vmem:[#allocation2 + $0x18] sm:$0xff]
  %v594 = vld [vmem:[#allocation2 + $0x20] sm:$0xff]
  %v595 = vld [vmem:[#allocation2 + $0x28] sm:$0xff]
  %v596 = vld [vmem:[#allocation2 + $0x30] sm:$0xff]
  %v597 = vld [vmem:[#allocation2 + $0x38] sm:$0xff]
  %v598 = vld [vmem:[#allocation2 + $0x40] sm:$0xff]
  %v599 = vld [vmem:[#allocation2 + $0x48] sm:$0xff]
  %v600 = vld [vmem:[#allocation2 + $0x50] sm:$0xff]
  %v601 = vld [vmem:[#allocation2 + $0x58] sm:$0xff]
  %v602 = vld [vmem:[#allocation2 + $0x60] sm:$0xff]
  %v603 = vld [vmem:[#allocation2 + $0x68] sm:$0xff]
  %v604 = vld [vmem:[#allocation2 + $0x70] sm:$0xff]
  %v605 = vld [vmem:[#allocation2 + $0x78] sm:$0xff]
  %v606 = vld [vmem:[#allocation2 + $0x80] sm:$0xff]
  %v607 = vld [vmem:[#allocation2 + $0x88] sm:$0xff]
  %v608 = vld [vmem:[#allocation2 + $0x90] sm:$0xff]
  %v609 = vld [vmem:[#allocation2 + $0x98] sm:$0xff]
  %v611 = vsel %vm117, %v589, 0
  %613 = vmatprep.subr.mxu0 %v591
  %614 = vmatpush1.msra.mxu0 %v590
  %615 = vmatprep.subr.mxu0 %v593
  %616 = vmatpush1.msra.mxu0 %v592
  %617 = vmatprep.subr.mxu0 %v595
  %618 = vmatpush1.msra.mxu0 %v594
  %619 = vmatprep.subr.mxu0 %v597
  %620 = vmatpush1.msra.mxu0 %v596
  %621 = vmatprep.subr.mxu0 %v599
  %622 = vmatpush1.msra.mxu0 %v598
  %623 = vmatprep.subr.mxu0 %v601
  %624 = vmatpush1.msra.mxu0 %v600
  %625 = vmatprep.subr.mxu0 %v603
  %626 = vmatpush1.msra.mxu0 %v602
  %627 = vmatprep.subr.mxu0 %v605
  %628 = vmatpush1.msra.mxu0 %v604
  %629 = vmatprep.subr.mxu0 %v607
  %630 = vmatpush1.msra.mxu0 %v606
  %631 = vmatprep.subr.mxu0 %v609
  %632 = vmatpush1.msra.mxu0 %v608
  %633 = vmatprep.subr.mxu0 0.0
  %634 = vmatpush1.msra.mxu0 0.0
  %635 = vmatprep.subr.mxu0 0.0
  %636 = vmatpush1.msra.mxu0 0.0
  %637 = vmatprep.subr.mxu0 0.0
  %638 = vmatpush1.msra.mxu0 0.0
  %639 = vmatprep.subr.mxu0 0.0
  %640 = vmatpush1.msra.mxu0 0.0
  %641 = vmatprep.subr.mxu0 0.0
  %642 = vmatpush1.msra.mxu0 0.0
  %643 = vmatprep.subr.mxu0 0.0
  %644 = vmatpush1.msra.mxu0 0.0
  %645 = vmatprep.subr.mxu0 0.0
  %646 = vmatpush1.msra.mxu0 0.0
  %647 = vmatprep.subr.mxu0 0.0
  %648 = vmatpush1.msra.mxu0 0.0
  %649 = vmatprep.subr.mxu0 0.0
  %650 = vmatpush1.msra.mxu0 0.0
  %651 = vmatprep.subr.mxu0 0.0
  %652 = vmatpush1.msra.mxu0 0.0
  %653 = vmatprep.subr.mxu0 0.0
  %654 = vmatpush1.msra.mxu0 0.0
  %655 = vmatprep.subr.mxu0 0.0
  %656 = vmatpush1.msra.mxu0 0.0
  %657 = vmatprep.subr.mxu0 0.0
  %658 = vmatpush1.msra.mxu0 0.0
  %659 = vmatprep.subr.mxu0 0.0
  %660 = vmatpush1.msra.mxu0 0.0
  %661 = vmatprep.subr.mxu0 0.0
  %662 = vmatpush1.msra.mxu0 0.0
  %663 = vmatprep.subr.mxu0 0.0
  %664 = vmatpush1.msra.mxu0 0.0
  %665 = vmatprep.subr.mxu0 0.0
  %666 = vmatpush1.msra.mxu0 0.0
  %667 = vmatprep.subr.mxu0 0.0
  %668 = vmatpush1.msra.mxu0 0.0
  %669 = vmatprep.subr.mxu0 0.0
  %670 = vmatpush1.msra.mxu0 0.0
  %671 = vmatprep.subr.mxu0 0.0
  %672 = vmatpush1.msra.mxu0 0.0
  %673 = vmatprep.subr.mxu0 0.0
  %674 = vmatpush1.msra.mxu0 0.0
  %675 = vmatprep.subr.mxu0 0.0
  %676 = vmatpush1.msra.mxu0 0.0
  %677 = vmatprep.mubr.f32.mxu0 0.0
  %678 = vmatmul.mubr.f32.gmra.mrb[0].mxu0 %v611
  %v679 = vpop.f32.mrb[0].mxu0
  %v680 = vadd.f32 0.0, %v679
  %v681 = vpop.f32.mrb[0].mxu0
  %v682 = vadd.f32 0.0, %v681
  %683 = vdwg.mxu0
  %v684 = vmax.f32 %v680, 0.0
  %v685 = vmax.f32 %v682, 0.0
  %686 = vst [vmem:[#allocation2] sm:$0xff] %v684
  %687 = vst [vmem:[#allocation2 + $0x8] sm:$0xff] %v685
  %688 = vrot.lane.b32.xlu0 %v684, 127
  %v689 = vpop.permute.xlu0 %688
  %690 = vrot.lane.b32.xlu0 %v685, 127
  %v691 = vpop.permute.xlu0 %690
  %v692 = vsel %vm28, %v689, %v691
  %v693 = vsel %vm28, %v691, %v689
  %694 = vst [vmem:[#allocation2 + $0x10] sm:$0xff] %v692
  %695 = vst [vmem:[#allocation2 + $0x18] sm:$0xff] %v693
  %696 = vrot.lane.b32.xlu0 %v684, 126
  %v697 = vpop.permute.xlu0 %696
  %698 = vrot.lane.b32.xlu0 %v685, 126
  %v699 = vpop.permute.xlu0 %698
  %v700 = vsel %vm37, %v697, %v699
  %v701 = vsel %vm37, %v699, %v697
  %702 = vst [vmem:[#allocation2 + $0x20] sm:$0xff] %v700
  %703 = vst [vmem:[#allocation2 + $0x28] sm:$0xff] %v701
  %704 = vrot.lane.b32.xlu0 %v684, 112
  %v705 = vpop.permute.xlu0 %704
  %706 = vrot.lane.b32.xlu0 %v685, 112
  %v707 = vpop.permute.xlu0 %706
  %v708 = vsel %vm46, %v705, %v707
  %v709 = vsel %vm46, %v707, %v705
  %710 = vst [vmem:[#allocation2 + $0x30] sm:$0xff] %v708
  %711 = vst [vmem:[#allocation2 + $0x38] sm:$0xff] %v709
  %712 = vrot.lane.b32.xlu0 %v684, 111
  %v713 = vpop.permute.xlu0 %712
  %714 = vrot.lane.b32.xlu0 %v685, 111
  %v715 = vpop.permute.xlu0 %714
  %v716 = vsel %vm55, %v713, %v715
  %v717 = vsel %vm55, %v715, %v713
  %718 = vst [vmem:[#allocation2 + $0x40] sm:$0xff] %v716
  %719 = vst [vmem:[#allocation2 + $0x48] sm:$0xff] %v717
  %720 = vrot.lane.b32.xlu0 %v684, 110
  %v721 = vpop.permute.xlu0 %720
  %722 = vrot.lane.b32.xlu0 %v685, 110
  %v723 = vpop.permute.xlu0 %722
  %v724 = vsel %vm64, %v721, %v723
  %v725 = vsel %vm64, %v723, %v721
  %726 = vst [vmem:[#allocation2 + $0x50] sm:$0xff] %v724
  %727 = vst [vmem:[#allocation2 + $0x58] sm:$0xff] %v725
  %728 = vrot.lane.b32.xlu0 %v684, 96
  %v729 = vpop.permute.xlu0 %728
  %730 = vrot.lane.b32.xlu0 %v685, 96
  %v731 = vpop.permute.xlu0 %730
  %v732 = vsel %vm73, %v729, %v731
  %v733 = vsel %vm73, %v731, %v729
  %734 = vst [vmem:[#allocation2 + $0x60] sm:$0xff] %v732
  %735 = vst [vmem:[#allocation2 + $0x68] sm:$0xff] %v733
  %736 = vrot.lane.b32.xlu0 %v684, 95
  %v737 = vpop.permute.xlu0 %736
  %738 = vrot.lane.b32.xlu0 %v685, 95
  %v739 = vpop.permute.xlu0 %738
  %v740 = vsel %vm82, %v737, %v739
  %v741 = vsel %vm82, %v739, %v737
  %742 = vst [vmem:[#allocation2 + $0x70] sm:$0xff] %v740
  %743 = vst [vmem:[#allocation2 + $0x78] sm:$0xff] %v741
  %744 = vrot.lane.b32.xlu0 %v684, 94
  %v745 = vpop.permute.xlu0 %744
  %746 = vrot.lane.b32.xlu0 %v685, 94
  %v747 = vpop.permute.xlu0 %746
  %v748 = vsel %vm91, %v745, %v747
  %v749 = vsel %vm91, %v747, %v745
  %750 = vst [vmem:[#allocation2 + $0x80] sm:$0xff] %v748
  %751 = vst [vmem:[#allocation2 + $0x88] sm:$0xff] %v749
  %v752 = vld [vmem:[%s1 + $0x8] sm:$0xff]
  %v753 = vld [vmem:[#allocation2] sm:$0xff]
  %v754 = vld [vmem:[#allocation2 + $0x8] sm:$0xff]
  %v755 = vld [vmem:[#allocation2 + $0x10] sm:$0xff]
  %v756 = vld [vmem:[#allocation2 + $0x18] sm:$0xff]
  %v757 = vld [vmem:[#allocation2 + $0x20] sm:$0xff]
  %v758 = vld [vmem:[#allocation2 + $0x28] sm:$0xff]
  %v759 = vld [vmem:[#allocation2 + $0x30] sm:$0xff]
  %v760 = vld [vmem:[#allocation2 + $0x38] sm:$0xff]
  %v761 = vld [vmem:[#allocation2 + $0x40] sm:$0xff]
  %v762 = vld [vmem:[#allocation2 + $0x48] sm:$0xff]
  %v763 = vld [vmem:[#allocation2 + $0x50] sm:$0xff]
  %v764 = vld [vmem:[#allocation2 + $0x58] sm:$0xff]
  %v765 = vld [vmem:[#allocation2 + $0x60] sm:$0xff]
  %v766 = vld [vmem:[#allocation2 + $0x68] sm:$0xff]
  %v767 = vld [vmem:[#allocation2 + $0x70] sm:$0xff]
  %v768 = vld [vmem:[#allocation2 + $0x78] sm:$0xff]
  %v769 = vld [vmem:[#allocation2 + $0x80] sm:$0xff]
  %v770 = vld [vmem:[#allocation2 + $0x88] sm:$0xff]
  %v771 = vld [vmem:[#allocation2 + $0x90] sm:$0xff]
  %v772 = vld [vmem:[#allocation2 + $0x98] sm:$0xff]
  %v774 = vsel %vm117, %v752, 0
  %776 = vmatprep.subr.mxu0 %v754
  %777 = vmatpush1.msra.mxu0 %v753
  %778 = vmatprep.subr.mxu0 %v756
  %779 = vmatpush1.msra.mxu0 %v755
  %780 = vmatprep.subr.mxu0 %v758
  %781 = vmatpush1.msra.mxu0 %v757
  %782 = vmatprep.subr.mxu0 %v760
  %783 = vmatpush1.msra.mxu0 %v759
  %784 = vmatprep.subr.mxu0 %v762
  %785 = vmatpush1.msra.mxu0 %v761
  %786 = vmatprep.subr.mxu0 %v764
  %787 = vmatpush1.msra.mxu0 %v763
  %788 = vmatprep.subr.mxu0 %v766
  %789 = vmatpush1.msra.mxu0 %v765
  %790 = vmatprep.subr.mxu0 %v768
  %791 = vmatpush1.msra.mxu0 %v767
  %792 = vmatprep.subr.mxu0 %v770
  %793 = vmatpush1.msra.mxu0 %v769
  %794 = vmatprep.subr.mxu0 %v772
  %795 = vmatpush1.msra.mxu0 %v771
  %796 = vmatprep.subr.mxu0 0.0
  %797 = vmatpush1.msra.mxu0 0.0
  %798 = vmatprep.subr.mxu0 0.0
  %799 = vmatpush1.msra.mxu0 0.0
  %800 = vmatprep.subr.mxu0 0.0
  %801 = vmatpush1.msra.mxu0 0.0
  %802 = vmatprep.subr.mxu0 0.0
  %803 = vmatpush1.msra.mxu0 0.0
  %804 = vmatprep.subr.mxu0 0.0
  %805 = vmatpush1.msra.mxu0 0.0
  %806 = vmatprep.subr.mxu0 0.0
  %807 = vmatpush1.msra.mxu0 0.0
  %808 = vmatprep.subr.mxu0 0.0
  %809 = vmatpush1.msra.mxu0 0.0
  %810 = vmatprep.subr.mxu0 0.0
  %811 = vmatpush1.msra.mxu0 0.0
  %812 = vmatprep.subr.mxu0 0.0
  %813 = vmatpush1.msra.mxu0 0.0
  %814 = vmatprep.subr.mxu0 0.0
  %815 = vmatpush1.msra.mxu0 0.0
  %816 = vmatprep.subr.mxu0 0.0
  %817 = vmatpush1.msra.mxu0 0.0
  %818 = vmatprep.subr.mxu0 0.0
  %819 = vmatpush1.msra.mxu0 0.0
  %820 = vmatprep.subr.mxu0 0.0
  %821 = vmatpush1.msra.mxu0 0.0
  %822 = vmatprep.subr.mxu0 0.0
  %823 = vmatpush1.msra.mxu0 0.0
  %824 = vmatprep.subr.mxu0 0.0
  %825 = vmatpush1.msra.mxu0 0.0
  %826 = vmatprep.subr.mxu0 0.0
  %827 = vmatpush1.msra.mxu0 0.0
  %828 = vmatprep.subr.mxu0 0.0
  %829 = vmatpush1.msra.mxu0 0.0
  %830 = vmatprep.subr.mxu0 0.0
  %831 = vmatpush1.msra.mxu0 0.0
  %832 = vmatprep.subr.mxu0 0.0
  %833 = vmatpush1.msra.mxu0 0.0
  %834 = vmatprep.subr.mxu0 0.0
  %835 = vmatpush1.msra.mxu0 0.0
  %836 = vmatprep.subr.mxu0 0.0
  %837 = vmatpush1.msra.mxu0 0.0
  %838 = vmatprep.subr.mxu0 0.0
  %839 = vmatpush1.msra.mxu0 0.0
  %840 = vmatprep.mubr.f32.mxu0 0.0
  %841 = vmatmul.mubr.f32.gmra.mrb[0].mxu0 %v774
  %v842 = vpop.f32.mrb[0].mxu0
  %v843 = vadd.f32 0.0, %v842
  %v844 = vpop.f32.mrb[0].mxu0
  %v845 = vadd.f32 0.0, %v844
  %846 = vdwg.mxu0
  %v847 = vmax.f32 %v843, 0.0
  %v848 = vmax.f32 %v845, 0.0
  %849 = vst [vmem:[#allocation2] sm:$0xff] %v847
  %850 = vst [vmem:[#allocation2 + $0x8] sm:$0xff] %v848
  %851 = vrot.lane.b32.xlu0 %v847, 127
  %v852 = vpop.permute.xlu0 %851
  %853 = vrot.lane.b32.xlu0 %v848, 127
  %v854 = vpop.permute.xlu0 %853
  %v855 = vsel %vm28, %v852, %v854
  %v856 = vsel %vm28, %v854, %v852
  %857 = vst [vmem:[#allocation2 + $0x10] sm:$0xff] %v855
  %858 = vst [vmem:[#allocation2 + $0x18] sm:$0xff] %v856
  %859 = vrot.lane.b32.xlu0 %v847, 126
  %v860 = vpop.permute.xlu0 %859
  %861 = vrot.lane.b32.xlu0 %v848, 126
  %v862 = vpop.permute.xlu0 %861
  %v863 = vsel %vm37, %v860, %v862
  %v864 = vsel %vm37, %v862, %v860
  %865 = vst [vmem:[#allocation2 + $0x20] sm:$0xff] %v863
  %866 = vst [vmem:[#allocation2 + $0x28] sm:$0xff] %v864
  %867 = vrot.lane.b32.xlu0 %v847, 112
  %v868 = vpop.permute.xlu0 %867
  %869 = vrot.lane.b32.xlu0 %v848, 112
  %v870 = vpop.permute.xlu0 %869
  %v871 = vsel %vm46, %v868, %v870
  %v872 = vsel %vm46, %v870, %v868
  %873 = vst [vmem:[#allocation2 + $0x30] sm:$0xff] %v871
  %874 = vst [vmem:[#allocation2 + $0x38] sm:$0xff] %v872
  %875 = vrot.lane.b32.xlu0 %v847, 111
  %v876 = vpop.permute.xlu0 %875
  %877 = vrot.lane.b32.xlu0 %v848, 111
  %v878 = vpop.permute.xlu0 %877
  %v879 = vsel %vm55, %v876, %v878
  %v880 = vsel %vm55, %v878, %v876
  %881 = vst [vmem:[#allocation2 + $0x40] sm:$0xff] %v879
  %882 = vst [vmem:[#allocation2 + $0x48] sm:$0xff] %v880
  %883 = vrot.lane.b32.xlu0 %v847, 110
  %v884 = vpop.permute.xlu0 %883
  %885 = vrot.lane.b32.xlu0 %v848, 110
  %v886 = vpop.permute.xlu0 %885
  %v887 = vsel %vm64, %v884, %v886
  %v888 = vsel %vm64, %v886, %v884
  %889 = vst [vmem:[#allocation2 + $0x50] sm:$0xff] %v887
  %890 = vst [vmem:[#allocation2 + $0x58] sm:$0xff] %v888
  %891 = vrot.lane.b32.xlu0 %v847, 96
  %v892 = vpop.permute.xlu0 %891
  %893 = vrot.lane.b32.xlu0 %v848, 96
  %v894 = vpop.permute.xlu0 %893
  %v895 = vsel %vm73, %v892, %v894
  %v896 = vsel %vm73, %v894, %v892
  %897 = vst [vmem:[#allocation2 + $0x60] sm:$0xff] %v895
  %898 = vst [vmem:[#allocation2 + $0x68] sm:$0xff] %v896
  %899 = vrot.lane.b32.xlu0 %v847, 95
  %v900 = vpop.permute.xlu0 %899
  %901 = vrot.lane.b32.xlu0 %v848, 95
  %v902 = vpop.permute.xlu0 %901
  %v903 = vsel %vm82, %v900, %v902
  %v904 = vsel %vm82, %v902, %v900
  %905 = vst [vmem:[#allocation2 + $0x70] sm:$0xff] %v903
  %906 = vst [vmem:[#allocation2 + $0x78] sm:$0xff] %v904
  %907 = vrot.lane.b32.xlu0 %v847, 94
  %v908 = vpop.permute.xlu0 %907
  %909 = vrot.lane.b32.xlu0 %v848, 94
  %v910 = vpop.permute.xlu0 %909
  %v911 = vsel %vm91, %v908, %v910
  %v912 = vsel %vm91, %v910, %v908
  %913 = vst [vmem:[#allocation2 + $0x80] sm:$0xff] %v911
  %914 = vst [vmem:[#allocation2 + $0x88] sm:$0xff] %v912
  %v915 = vld [vmem:[%s1 + $0x10] sm:$0xff]
  %v916 = vld [vmem:[#allocation2] sm:$0xff]
  %v917 = vld [vmem:[#allocation2 + $0x8] sm:$0xff]
  %v918 = vld [vmem:[#allocation2 + $0x10] sm:$0xff]
  %v919 = vld [vmem:[#allocation2 + $0x18] sm:$0xff]
  %v920 = vld [vmem:[#allocation2 + $0x20] sm:$0xff]
  %v921 = vld [vmem:[#allocation2 + $0x28] sm:$0xff]
  %v922 = vld [vmem:[#allocation2 + $0x30] sm:$0xff]
  %v923 = vld [vmem:[#allocation2 + $0x38] sm:$0xff]
  %v924 = vld [vmem:[#allocation2 + $0x40] sm:$0xff]
  %v925 = vld [vmem:[#allocation2 + $0x48] sm:$0xff]
  %v926 = vld [vmem:[#allocation2 + $0x50] sm:$0xff]
  %v927 = vld [vmem:[#allocation2 + $0x58] sm:$0xff]
  %v928 = vld [vmem:[#allocation2 + $0x60] sm:$0xff]
  %v929 = vld [vmem:[#allocation2 + $0x68] sm:$0xff]
  %v930 = vld [vmem:[#allocation2 + $0x70] sm:$0xff]
  %v931 = vld [vmem:[#allocation2 + $0x78] sm:$0xff]
  %v932 = vld [vmem:[#allocation2 + $0x80] sm:$0xff]
  %v933 = vld [vmem:[#allocation2 + $0x88] sm:$0xff]
  %v934 = vld [vmem:[#allocation2 + $0x90] sm:$0xff]
  %v935 = vld [vmem:[#allocation2 + $0x98] sm:$0xff]
  %v937 = vsel %vm117, %v915, 0
  %939 = vmatprep.subr.mxu0 %v917
  %940 = vmatpush1.msra.mxu0 %v916
  %941 = vmatprep.subr.mxu0 %v919
  %942 = vmatpush1.msra.mxu0 %v918
  %943 = vmatprep.subr.mxu0 %v921
  %944 = vmatpush1.msra.mxu0 %v920
  %945 = vmatprep.subr.mxu0 %v923
  %946 = vmatpush1.msra.mxu0 %v922
  %947 = vmatprep.subr.mxu0 %v925
  %948 = vmatpush1.msra.mxu0 %v924
  %949 = vmatprep.subr.mxu0 %v927
  %950 = vmatpush1.msra.mxu0 %v926
  %951 = vmatprep.subr.mxu0 %v929
  %952 = vmatpush1.msra.mxu0 %v928
  %953 = vmatprep.subr.mxu0 %v931
  %954 = vmatpush1.msra.mxu0 %v930
  %955 = vmatprep.subr.mxu0 %v933
  %956 = vmatpush1.msra.mxu0 %v932
  %957 = vmatprep.subr.mxu0 %v935
  %958 = vmatpush1.msra.mxu0 %v934
  %959 = vmatprep.subr.mxu0 0.0
  %960 = vmatpush1.msra.mxu0 0.0
  %961 = vmatprep.subr.mxu0 0.0
  %962 = vmatpush1.msra.mxu0 0.0
  %963 = vmatprep.subr.mxu0 0.0
  %964 = vmatpush1.msra.mxu0 0.0
  %965 = vmatprep.subr.mxu0 0.0
  %966 = vmatpush1.msra.mxu0 0.0
  %967 = vmatprep.subr.mxu0 0.0
  %968 = vmatpush1.msra.mxu0 0.0
  %969 = vmatprep.subr.mxu0 0.0
  %970 = vmatpush1.msra.mxu0 0.0
  %971 = vmatprep.subr.mxu0 0.0
  %972 = vmatpush1.msra.mxu0 0.0
  %973 = vmatprep.subr.mxu0 0.0
  %974 = vmatpush1.msra.mxu0 0.0
  %975 = vmatprep.subr.mxu0 0.0
  %976 = vmatpush1.msra.mxu0 0.0
  %977 = vmatprep.subr.mxu0 0.0
  %978 = vmatpush1.msra.mxu0 0.0
  %979 = vmatprep.subr.mxu0 0.0
  %980 = vmatpush1.msra.mxu0 0.0
  %981 = vmatprep.subr.mxu0 0.0
  %982 = vmatpush1.msra.mxu0 0.0
  %983 = vmatprep.subr.mxu0 0.0
  %984 = vmatpush1.msra.mxu0 0.0
  %985 = vmatprep.subr.mxu0 0.0
  %986 = vmatpush1.msra.mxu0 0.0
  %987 = vmatprep.subr.mxu0 0.0
  %988 = vmatpush1.msra.mxu0 0.0
  %989 = vmatprep.subr.mxu0 0.0
  %990 = vmatpush1.msra.mxu0 0.0
  %991 = vmatprep.subr.mxu0 0.0
  %992 = vmatpush1.msra.mxu0 0.0
  %993 = vmatprep.subr.mxu0 0.0
  %994 = vmatpush1.msra.mxu0 0.0
  %995 = vmatprep.subr.mxu0 0.0
  %996 = vmatpush1.msra.mxu0 0.0
  %997 = vmatprep.subr.mxu0 0.0
  %998 = vmatpush1.msra.mxu0 0.0
  %999 = vmatprep.subr.mxu0 0.0
  %1000 = vmatpush1.msra.mxu0 0.0
  %1001 = vmatprep.subr.mxu0 0.0
  %1002 = vmatpush1.msra.mxu0 0.0
  %1003 = vmatprep.mubr.f32.mxu0 0.0
  %1004 = vmatmul.mubr.f32.gmra.mrb[0].mxu0 %v937
  %v1005 = vpop.f32.mrb[0].mxu0
  %v1006 = vadd.f32 0.0, %v1005
  %v1007 = vpop.f32.mrb[0].mxu0
  %v1008 = vadd.f32 0.0, %v1007
  %1009 = vdwg.mxu0
  %s1010 = scalar_lea.vmem %s2, 16
  %1011 = vst [vmem:[%s1010] sm:$0xff] %v1006
  %1012 = vst [vmem:[%s1010 + $0x8] sm:$0xff] %v1008
  // Predicated region
  $region10: #{zerolite_forward.1} parent=0 // pred_check
    _
  $region11: #{zerolite_forward.1} parent=0 // pred_check_branch
    %1014 = sbr.rel (0) target = $region13
  $region12: #{zerolite_forward.1} parent=0 // pred_region
    _
  $region13: #{zerolite_forward.1} parent=0 // pred_fallthru
    _
  // Predicated region
  $region14: #{zerolite_forward.1} parent=0 // pred_check
    _
  $region15: #{zerolite_forward.1} parent=0 // pred_check_branch
    %1016 = sbr.rel (0) target = $region17
  $region16: #{zerolite_forward.1} parent=0 // pred_region
    _
  $region17: #{zerolite_forward.1} parent=0 // pred_fallthru
    _

</llo_original>
